<compile_context>
chip_gen: v7x
topology: tpu7x:2x2x1
jax: 0.10.0
libtpu: 0.0.40
codegen_flags: <defaults>
</compile_context>

<pallas_src>
import jax
import jax.numpy as jnp
from jax.experimental import pallas as pl
from jax.experimental.pallas import tpu as pltpu


def _round_up(v, m):
    return ((v + m - 1) // m) * m


def _vmem_limit(buffer_bytes):
    # buffer estimate + 8 MiB headroom, clamped to a range that is safe on
    # v5e/v6e (128 MiB physical VMEM) as well as v7x (64 MiB physical VMEM).
    return int(min(max(buffer_bytes + (8 << 20), 16 << 20), 48 << 20))


_FUSED_BUDGET_BYTES = 28 << 20      # VMEM budget allowed for the fused path
_SUPPORT_RESIDENT_BYTES = 8 << 20   # raw-size cap for VMEM-resident support


# ---------------------------------------------------------------------------
# Fused path (small graphs): adj, x, W, support, out all resident in VMEM.
#   out = relu(adj @ (x @ W)), all-f32 accumulation. One kernel, one launch.
# ---------------------------------------------------------------------------
def _fused_kernel(x_ref, w_ref, adj_ref, o_ref, sup_ref):
    sup_ref[...] = jnp.dot(
        x_ref[...], w_ref[...], preferred_element_type=jnp.float32
    )
    o_ref[...] = jnp.maximum(
        jnp.dot(adj_ref[...], sup_ref[...], preferred_element_type=jnp.float32),
        0.0,
    )


# ---------------------------------------------------------------------------
# Streamed path (large graphs, HBM-bound on adj):
#   * adj stays f32 in HBM, cast to bf16 per tile inside the kernel (free VPU
#     work; avoids a full wrapper-side pad+cast HBM pass over N^2 elements).
#   * support (bf16) is either fully VMEM-resident (index_map constant -> the
#     pipeline loads it once) or streamed per k tile.
#   * f32 accumulation directly into the resident output block, ReLU on last k.
# ---------------------------------------------------------------------------
def _make_aggregate_kernel(k_tile, support_resident):
    def kernel(adj_ref, sup_ref, o_ref):
        k = pl.program_id(1)

        @pl.when(k == 0)
        def _():
            o_ref[...] = jnp.zeros_like(o_ref)

        if support_resident:
            start = pl.multiple_of(k * k_tile, k_tile)
            sup = sup_ref[pl.ds(start, k_tile), :]
        else:
            sup = sup_ref[...]

        o_ref[...] += jnp.dot(
            adj_ref[...].astype(jnp.bfloat16),
            sup,
            preferred_element_type=jnp.float32,
        )

        @pl.when(k == pl.num_programs(1) - 1)
        def _():
            o_ref[...] = jnp.maximum(o_ref[...], 0.0)

    return kernel


def graph_convolution(x, adj, weight, *, row_tile=512, k_tile=512,
                      force_streamed=False):
    """Pallas GCN forward: relu(adj @ (x @ weight)).

    x:      (N, F_in)     float32
    adj:    (N, N)        float32 (dense; torch.spmm semantics == dense matmul)
    weight: (F_in, F_out) float32
    """
    # TODO(synk): training-mode dropout (p>0) would need pltpu PRNG in-kernel;
    # module default p=0.0 / eval mode is the identity, so it is omitted.
    N, f_in = x.shape
    f_out = weight.shape[1]
    assert adj.shape == (N, N)

    f_out_pad = _round_up(f_out, 128)   # lane-dense output stores

    # ---- Fused path: everything resident in VMEM ---------------------------
    n_pad = _round_up(N, 128)
    f_in_pad = _round_up(f_in, 128)
    fused_budget = (
        2 * (n_pad * n_pad * 4              # adj   (pipeline double-buffer)
             + n_pad * f_in_pad * 4         # x
             + f_in_pad * f_out_pad * 4     # W
             + n_pad * f_out_pad * 4)       # out
        + n_pad * f_out_pad * 4             # support scratch
    )
    if not force_streamed and fused_budget <= _FUSED_BUDGET_BYTES:
        x_p = jnp.pad(x.astype(jnp.float32),
                      ((0, n_pad - N), (0, f_in_pad - f_in)))
        w_p = jnp.pad(weight.astype(jnp.float32),
                      ((0, f_in_pad - f_in), (0, f_out_pad - f_out)))
        adj_p = jnp.pad(adj.astype(jnp.float32),
                        ((0, n_pad - N), (0, n_pad - N)))

        out_p = pl.pallas_call(
            _fused_kernel,
            out_shape=jax.ShapeDtypeStruct((n_pad, f_out_pad), jnp.float32),
            grid_spec=pltpu.PrefetchScalarGridSpec(
                num_scalar_prefetch=0,
                grid=(1,),
                in_specs=[
                    pl.BlockSpec((n_pad, f_in_pad), lambda i: (0, 0)),
                    pl.BlockSpec((f_in_pad, f_out_pad), lambda i: (0, 0)),
                    pl.BlockSpec((n_pad, n_pad), lambda i: (0, 0)),
                ],
                out_specs=pl.BlockSpec((n_pad, f_out_pad), lambda i: (0, 0)),
                scratch_shapes=[pltpu.VMEM((n_pad, f_out_pad), jnp.float32)],
            ),
            compiler_params=pltpu.CompilerParams(
                dimension_semantics=("arbitrary",),
                vmem_limit_bytes=_vmem_limit(fused_budget),
            ),
        )(x_p, w_p, adj_p)
        return out_p[:N, :f_out]

    # ---- Streamed path (HBM-bound on adj) ----------------------------------
    assert row_tile % 16 == 0           # bf16 sublane packing
    assert k_tile % 128 == 0

    # Keep at least 2 row tiles so both v7x TensorCores have work.
    while row_tile > 256 and _round_up(N, row_tile) // row_tile < 2:
        row_tile //= 2

    n_row_pad = _round_up(N, row_tile)
    n_k_pad = _round_up(N, k_tile)

    # Stage 1 (compute-trivial): support = x @ W in plain XLA, stored bf16 so
    # the HBM-bound aggregation reads half the bytes.
    sup = jnp.dot(x.astype(jnp.float32), weight.astype(jnp.float32),
                  preferred_element_type=jnp.float32)
    sup_p = jnp.pad(sup, ((0, n_k_pad - N), (0, f_out_pad - f_out))
                    ).astype(jnp.bfloat16)

    # adj stays f32 in HBM (no wrapper-side cast pass); cast per-tile in-kernel.
    adj_p = jnp.pad(adj.astype(jnp.float32),
                    ((0, n_row_pad - N), (0, n_k_pad - N)))

    sup_raw_bytes = n_k_pad * f_out_pad * 2
    support_resident = sup_raw_bytes <= _SUPPORT_RESIDENT_BYTES
    if support_resident:
        # Full-array block, constant index -> loaded once, stays resident.
        sup_spec = pl.BlockSpec((n_k_pad, f_out_pad), lambda i, k: (0, 0))
        sup_buf = 2 * sup_raw_bytes
    else:
        sup_spec = pl.BlockSpec((k_tile, f_out_pad), lambda i, k: (k, 0))
        sup_buf = 2 * k_tile * f_out_pad * 2

    budget = (2 * row_tile * k_tile * 4        # f32 adj tiles, double-buffered
              + sup_buf
              + 2 * row_tile * f_out_pad * 4)  # f32 output tiles

    out_p = pl.pallas_call(
        _make_aggregate_kernel(k_tile, support_resident),
        out_shape=jax.ShapeDtypeStruct((n_row_pad, f_out_pad), jnp.float32),
        grid_spec=pltpu.PrefetchScalarGridSpec(
            num_scalar_prefetch=0,
            grid=(n_row_pad // row_tile, n_k_pad // k_tile),
            in_specs=[
                pl.BlockSpec((row_tile, k_tile), lambda i, k: (i, k)),
                sup_spec,
            ],
            out_specs=pl.BlockSpec((row_tile, f_out_pad), lambda i, k: (i, 0)),
        ),
        compiler_params=pltpu.CompilerParams(
            # row axis independent -> parallel (megacore on v7x);
            # k axis is the reduction -> arbitrary (output block resident).
            dimension_semantics=("parallel", "arbitrary"),
            vmem_limit_bytes=_vmem_limit(budget),
        ),
    )(adj_p, sup_p)

    return out_p[:N, :f_out]


def xavier_uniform(key, shape, dtype=jnp.float32):
    # matches torch.nn.init.xavier_uniform_ (gain=1)
    fan_in, fan_out = shape
    limit = jnp.sqrt(6.0 / (fan_in + fan_out))
    return jax.random.uniform(key, shape, dtype, minval=-limit, maxval=limit)


if __name__ == "__main__":
    # Small shapes consistent with the module: N nodes, F_in -> F_out features.
    N, F_IN, F_OUT = 512, 64, 64

    key = jax.random.PRNGKey(0)
    k_x, k_a, k_w = jax.random.split(key, 3)

    x = jax.random.normal(k_x, (N, F_IN), dtype=jnp.float32)

    # Symmetric normalized adjacency (dense), as a GCN would consume.
    a_raw = (jax.random.uniform(k_a, (N, N)) < 0.1).astype(jnp.float32)
    a_sym = jnp.maximum(a_raw, a_raw.T) + jnp.eye(N, dtype=jnp.float32)
    d_inv_sqrt = 1.0 / jnp.sqrt(jnp.sum(a_sym, axis=1))
    adj = a_sym * d_inv_sqrt[:, None] * d_inv_sqrt[None, :]

    weight = xavier_uniform(k_w, (F_IN, F_OUT))

    ref = jnp.maximum(adj @ (x @ weight), 0.0)

    # Fused (small-N) path: all-f32 single kernel.
    out_fused = jax.block_until_ready(graph_convolution(x, adj, weight))
    assert out_fused.shape == (N, F_OUT)
    assert jnp.allclose(out_fused, ref, atol=3e-2, rtol=3e-2)

    # Streamed (large-N) path, forced at this small shape to exercise it:
    # bf16 MXU operands with f32 accumulation -> slightly looser tolerance.
    out_streamed = jax.block_until_ready(
        graph_convolution(x, adj, weight, force_streamed=True))
    assert out_streamed.shape == (N, F_OUT)
    assert jnp.allclose(out_streamed, ref, atol=3e-2, rtol=3e-2)

    print("KERNEL_OK")
</pallas_src>

<mosaic_0001>
module attributes {stable_mosaic.version = 11 : i64} {
  func.func @_fused_kernel(%arg0: i32, %arg1: memref<512x128xf32, #tpu.memory_space<vmem>>, %arg2: memref<128x128xf32, #tpu.memory_space<vmem>>, %arg3: memref<512x512xf32, #tpu.memory_space<vmem>>, %arg4: memref<512x128xf32, #tpu.memory_space<vmem>>, %arg5: memref<512x128xf32, #tpu.memory_space<vmem>>) attributes {dimension_semantics = [#tpu.dimension_semantics<arbitrary>], iteration_bounds = array<i64: 1>, scalar_prefetch = 0 : i64, scratch_operands = 1 : i64, tpu.core_type = #tpu.core_type<tc>, window_params = [{pipeline_mode = #tpu.pipeline_mode<synchronous>, transform_indices = @transform_0, window_bounds = array<i64: 512, 128>}, {pipeline_mode = #tpu.pipeline_mode<synchronous>, transform_indices = @transform_1, window_bounds = array<i64: 128, 128>}, {pipeline_mode = #tpu.pipeline_mode<synchronous>, transform_indices = @transform_2, window_bounds = array<i64: 512, 512>}, {pipeline_mode = #tpu.pipeline_mode<synchronous>, transform_indices = @transform_3, window_bounds = array<i64: 512, 128>}]} {
    %c0 = arith.constant 0 : index
    %c0_0 = arith.constant 0 : index
    %0 = vector.load %arg1[%c0, %c0_0] : memref<512x128xf32, #tpu.memory_space<vmem>>, vector<512x128xf32>
    %c0_1 = arith.constant 0 : index
    %c0_2 = arith.constant 0 : index
    %1 = vector.load %arg2[%c0_1, %c0_2] : memref<128x128xf32, #tpu.memory_space<vmem>>, vector<128x128xf32>
    %cst = arith.constant dense<0.000000e+00> : vector<512x128xf32>
    %2 = tpu.matmul %0, %1, %cst {dimension_numbers = #tpu.dot_dimension_numbers<[1], [0], [0], [1], [0, 0, 1, 1], [], []>} : vector<512x128xf32>, vector<128x128xf32>, vector<512x128xf32> -> vector<512x128xf32>
    %c0_3 = arith.constant 0 : index
    %c0_4 = arith.constant 0 : index
    %3 = vector.load %arg5[%c0_3, %c0_4] : memref<512x128xf32, #tpu.memory_space<vmem>>, vector<512x128xf32>
    tpu.vector_store %arg5[%c0_3, %c0_4], %2 {strides = array<i32>} : memref<512x128xf32, #tpu.memory_space<vmem>>, vector<512x128xf32>,
    %c0_5 = arith.constant 0 : index
    %c0_6 = arith.constant 0 : index
    %4 = vector.load %arg3[%c0_5, %c0_6] : memref<512x512xf32, #tpu.memory_space<vmem>>, vector<512x512xf32>
    %c0_7 = arith.constant 0 : index
    %c0_8 = arith.constant 0 : index
    %5 = vector.load %arg5[%c0_7, %c0_8] : memref<512x128xf32, #tpu.memory_space<vmem>>, vector<512x128xf32>
    %cst_9 = arith.constant dense<0.000000e+00> : vector<512x128xf32>
    %6 = tpu.matmul %4, %5, %cst_9 {dimension_numbers = #tpu.dot_dimension_numbers<[1], [0], [0], [1], [0, 0, 1, 1], [], []>} : vector<512x512xf32>, vector<512x128xf32>, vector<512x128xf32> -> vector<512x128xf32>
    %cst_10 = arith.constant 0.000000e+00 : f32
    %7 = vector.broadcast %cst_10 : f32 to vector<512x128xf32>
    %8 = arith.maximumf %6, %7 : vector<512x128xf32>
    %c0_11 = arith.constant 0 : index
    %c0_12 = arith.constant 0 : index
    %9 = vector.load %arg4[%c0_11, %c0_12] : memref<512x128xf32, #tpu.memory_space<vmem>>, vector<512x128xf32>
    tpu.vector_store %arg4[%c0_11, %c0_12], %8 {strides = array<i32>} : memref<512x128xf32, #tpu.memory_space<vmem>>, vector<512x128xf32>,
    return
  }
  func.func @transform_0(%arg0: i32) -> (i32, i32) {
    %c0_i32 = arith.constant 0 : i32
    %c0_i32_0 = arith.constant 0 : i32
    %c0_i32_1 = arith.constant 0 : i32
    return %c0_i32, %c0_i32_0 : i32, i32
  }
  func.func @transform_1(%arg0: i32) -> (i32, i32) {
    %c0_i32 = arith.constant 0 : i32
    %c0_i32_0 = arith.constant 0 : i32
    %c0_i32_1 = arith.constant 0 : i32
    return %c0_i32, %c0_i32_0 : i32, i32
  }
  func.func @transform_2(%arg0: i32) -> (i32, i32) {
    %c0_i32 = arith.constant 0 : i32
    %c0_i32_0 = arith.constant 0 : i32
    %c0_i32_1 = arith.constant 0 : i32
    return %c0_i32, %c0_i32_0 : i32, i32
  }
  func.func @transform_3(%arg0: i32) -> (i32, i32) {
    %c0_i32 = arith.constant 0 : i32
    %c0_i32_0 = arith.constant 0 : i32
    %c0_i32_1 = arith.constant 0 : i32
    return %c0_i32, %c0_i32_0 : i32, i32
  }
}

</mosaic_0001>

<llo_original>
// kernel: tpu_custom_call.1
$region0: #{tpu_custom_call.1}
  #allocation0 [shape = 'u32[]', space=smem, size = 0x4, offset = 0x4, fixed_abs, tag = 'smem constant byte address 0x4 - core index']
  #allocation1 [shape = 'u32[144,128]{1,0:T(1,128)}', space=vmem, size = 0x12000, scoped, tag = 'internal scratch']
  #allocation2 [shape = 'f32[512,128]{1,0:T(8,128)}', space=vmem, size = 0x40000, scoped, tag = 'scratch operand']
  %s0 = inlined_call_operand.hbm [shape: f32[512,128], index: 0, kind: input, shape index: {}]
  %s1 = inlined_call_operand.hbm [shape: f32[128,128], index: 1, kind: input, shape index: {}]
  %s2 = inlined_call_operand.hbm [shape: f32[512,512], index: 2, kind: input, shape index: {}]
  %s3 = inlined_call_operand.hbm [shape: f32[512,128], index: 3, kind: output, shape index: {}]
  %s4 = sld [smem:[#allocation0]]
  $region34: #{tpu_custom_call.1} parent=0
    _
  %s6 = ssub.s32 1, %s4
  %s7 = scalar_select 0, %s6, %s4
  $region1: #{tpu_custom_call.1} parent=0
    #allocation3 [shape = 'u8[262144]{0}', space=vmem, size = 0x40000, scoped, tag = 'input window, operand 0, single buffered']
    #allocation4 [shape = 's32[1]{0}', space=sflag, size = 0x4, scoped, tag = 'scoped memory for tpu_custom_call.1']
    #allocation5 [shape = 's32[1]{0}', space=sflag, size = 0x4, scoped, tag = 'scoped memory for tpu_custom_call.1']
    #allocation6 [shape = 'u8[65536]{0}', space=vmem, size = 0x10000, scoped, tag = 'input window, operand 1, single buffered']
    #allocation7 [shape = 's32[1]{0}', space=sflag, size = 0x4, scoped, tag = 'scoped memory for tpu_custom_call.1']
    #allocation8 [shape = 'u8[1048576]{0}', space=vmem, size = 0x100000, scoped, tag = 'input window, operand 2, single buffered']
    #allocation9 [shape = 'u8[262144]{0}', space=vmem, size = 0x40000, scoped, tag = 'output window, operand 0, single buffered']
    %8 = vsyncpa [#allocation4], 0
    %9 = vsyncpa [#allocation7], 0
    %10 = vsyncpa [#allocation5], 0
    // Predicated region
    $region2: #{tpu_custom_call.1} parent=1 // pred_check
      _
    $region3: #{tpu_custom_call.1} parent=1 // pred_check_branch
      %12 = sbr.rel (0) target = $region5
    $region4: #{tpu_custom_call.1} parent=1 // pred_region
      %s14 = ssub.s32 8192, 8192
      %15 = vsyncadd [#allocation4], %s14
      %s16 = sshll.u32 [#allocation3], 4
      %s17 = int_to_ptr.vmem [resolvable:$true] %s16
      %22 = dma.hbm_to_vmem [thread:$0]  %s0, 8192, %s17, [#allocation4], 128, 128, 8
    $region5: #{tpu_custom_call.1} parent=1 // pred_fallthru
      _
    // Predicated region
    $region6: #{tpu_custom_call.1} parent=1 // pred_check
      _
    $region7: #{tpu_custom_call.1} parent=1 // pred_check_branch
      %24 = sbr.rel (0) target = $region9
    $region8: #{tpu_custom_call.1} parent=1 // pred_region
      %s26 = ssub.s32 2048, 2048
      %27 = vsyncadd [#allocation7], %s26
      %s28 = sshll.u32 [#allocation6], 4
      %s29 = int_to_ptr.vmem [resolvable:$true] %s28
      %34 = dma.hbm_to_vmem [thread:$0]  %s1, 2048, %s29, [#allocation7], 128, 128, 8
    $region9: #{tpu_custom_call.1} parent=1 // pred_fallthru
      _
    // Predicated region
    $region10: #{tpu_custom_call.1} parent=1 // pred_check
      _
    $region11: #{tpu_custom_call.1} parent=1 // pred_check_branch
      %36 = sbr.rel (0) target = $region13
    $region12: #{tpu_custom_call.1} parent=1 // pred_region
      %s38 = ssub.s32 32768, 32768
      %39 = vsyncadd [#allocation7], %s38
      %s40 = sshll.u32 [#allocation8], 4
      %s41 = int_to_ptr.vmem [resolvable:$true] %s40
      %46 = dma.hbm_to_vmem [thread:$0]  %s2, 32768, %s41, [#allocation7], 512, 512, 32
    $region13: #{tpu_custom_call.1} parent=1 // pred_fallthru
      _
    // Predicated region
    $region14: #{tpu_custom_call.1} parent=1 // pred_check
      _
    $region15: #{tpu_custom_call.1} parent=1 // pred_check_branch
      %48 = sbr.rel (0) target = $region17
    $region16: #{tpu_custom_call.1} parent=1 // pred_region
      %49 = dma.done [#allocation4], 8192
    $region17: #{tpu_custom_call.1} parent=1 // pred_fallthru
      _
    // Predicated region
    $region18: #{tpu_custom_call.1} parent=1 // pred_check
      _
    $region19: #{tpu_custom_call.1} parent=1 // pred_check_branch
      %51 = sbr.rel (0) target = $region21
    $region20: #{tpu_custom_call.1} parent=1 // pred_region
      %52 = dma.done [#allocation7], 2048
    $region21: #{tpu_custom_call.1} parent=1 // pred_fallthru
      _
    // Predicated region
    $region22: #{tpu_custom_call.1} parent=1 // pred_check
      _
    $region23: #{tpu_custom_call.1} parent=1 // pred_check_branch
      %54 = sbr.rel (0) target = $region25
    $region24: #{tpu_custom_call.1} parent=1 // pred_region
      %55 = dma.done [#allocation7], 32768
    $region25: #{tpu_custom_call.1} parent=1 // pred_fallthru
      _
    %v56 = vld [vmem:[#allocation3] sm:$0xff]
    %v57 = vld [vmem:[#allocation3 + $0x8] sm:$0xff]
    %v58 = vld [vmem:[#allocation3 + $0x10] sm:$0xff]
    %v59 = vld [vmem:[#allocation3 + $0x18] sm:$0xff]
    %v60 = vld [vmem:[#allocation3 + $0x20] sm:$0xff]
    %v61 = vld [vmem:[#allocation3 + $0x28] sm:$0xff]
    %v62 = vld [vmem:[#allocation3 + $0x30] sm:$0xff]
    %v63 = vld [vmem:[#allocation3 + $0x38] sm:$0xff]
    %v64 = vld [vmem:[#allocation3 + $0x40] sm:$0xff]
    %v65 = vld [vmem:[#allocation3 + $0x48] sm:$0xff]
    %v66 = vld [vmem:[#allocation3 + $0x50] sm:$0xff]
    %v67 = vld [vmem:[#allocation3 + $0x58] sm:$0xff]
    %v68 = vld [vmem:[#allocation3 + $0x60] sm:$0xff]
    %v69 = vld [vmem:[#allocation3 + $0x68] sm:$0xff]
    %v70 = vld [vmem:[#allocation3 + $0x70] sm:$0xff]
    %v71 = vld [vmem:[#allocation3 + $0x78] sm:$0xff]
    %v72 = vld [vmem:[#allocation3 + $0x80] sm:$0xff]
    %v73 = vld [vmem:[#allocation3 + $0x88] sm:$0xff]
    %v74 = vld [vmem:[#allocation3 + $0x90] sm:$0xff]
    %v75 = vld [vmem:[#allocation3 + $0x98] sm:$0xff]
    %v76 = vld [vmem:[#allocation3 + $0xa0] sm:$0xff]
    %v77 = vld [vmem:[#allocation3 + $0xa8] sm:$0xff]
    %v78 = vld [vmem:[#allocation3 + $0xb0] sm:$0xff]
    %v79 = vld [vmem:[#allocation3 + $0xb8] sm:$0xff]
    %v80 = vld [vmem:[#allocation3 + $0xc0] sm:$0xff]
    %v81 = vld [vmem:[#allocation3 + $0xc8] sm:$0xff]
    %v82 = vld [vmem:[#allocation3 + $0xd0] sm:$0xff]
    %v83 = vld [vmem:[#allocation3 + $0xd8] sm:$0xff]
    %v84 = vld [vmem:[#allocation3 + $0xe0] sm:$0xff]
    %v85 = vld [vmem:[#allocation3 + $0xe8] sm:$0xff]
    %v86 = vld [vmem:[#allocation3 + $0xf0] sm:$0xff]
    %v87 = vld [vmem:[#allocation3 + $0xf8] sm:$0xff]
    %v88 = vld [vmem:[#allocation3 + $0x100] sm:$0xff]
    %v89 = vld [vmem:[#allocation3 + $0x108] sm:$0xff]
    %v90 = vld [vmem:[#allocation3 + $0x110] sm:$0xff]
    %v91 = vld [vmem:[#allocation3 + $0x118] sm:$0xff]
    %v92 = vld [vmem:[#allocation3 + $0x120] sm:$0xff]
    %v93 = vld [vmem:[#allocation3 + $0x128] sm:$0xff]
    %v94 = vld [vmem:[#allocation3 + $0x130] sm:$0xff]
    %v95 = vld [vmem:[#allocation3 + $0x138] sm:$0xff]
    %v96 = vld [vmem:[#allocation3 + $0x140] sm:$0xff]
    %v97 = vld [vmem:[#allocation3 + $0x148] sm:$0xff]
    %v98 = vld [vmem:[#allocation3 + $0x150] sm:$0xff]
    %v99 = vld [vmem:[#allocation3 + $0x158] sm:$0xff]
    %v100 = vld [vmem:[#allocation3 + $0x160] sm:$0xff]
    %v101 = vld [vmem:[#allocation3 + $0x168] sm:$0xff]
    %v102 = vld [vmem:[#allocation3 + $0x170] sm:$0xff]
    %v103 = vld [vmem:[#allocation3 + $0x178] sm:$0xff]
    %v104 = vld [vmem:[#allocation3 + $0x180] sm:$0xff]
    %v105 = vld [vmem:[#allocation3 + $0x188] sm:$0xff]
    %v106 = vld [vmem:[#allocation3 + $0x190] sm:$0xff]
    %v107 = vld [vmem:[#allocation3 + $0x198] sm:$0xff]
    %v108 = vld [vmem:[#allocation3 + $0x1a0] sm:$0xff]
    %v109 = vld [vmem:[#allocation3 + $0x1a8] sm:$0xff]
    %v110 = vld [vmem:[#allocation3 + $0x1b0] sm:$0xff]
    %v111 = vld [vmem:[#allocation3 + $0x1b8] sm:$0xff]
    %v112 = vld [vmem:[#allocation3 + $0x1c0] sm:$0xff]
    %v113 = vld [vmem:[#allocation3 + $0x1c8] sm:$0xff]
    %v114 = vld [vmem:[#allocation3 + $0x1d0] sm:$0xff]
    %v115 = vld [vmem:[#allocation3 + $0x1d8] sm:$0xff]
    %v116 = vld [vmem:[#allocation3 + $0x1e0] sm:$0xff]
    %v117 = vld [vmem:[#allocation3 + $0x1e8] sm:$0xff]
    %v118 = vld [vmem:[#allocation3 + $0x1f0] sm:$0xff]
    %v119 = vld [vmem:[#allocation3 + $0x1f8] sm:$0xff]
    %v120 = vld [vmem:[#allocation6] sm:$0xff]
    %v121 = vld [vmem:[#allocation6 + $0x8] sm:$0xff]
    %v122 = vld [vmem:[#allocation6 + $0x10] sm:$0xff]
    %v123 = vld [vmem:[#allocation6 + $0x18] sm:$0xff]
    %v124 = vld [vmem:[#allocation6 + $0x20] sm:$0xff]
    %v125 = vld [vmem:[#allocation6 + $0x28] sm:$0xff]
    %v126 = vld [vmem:[#allocation6 + $0x30] sm:$0xff]
    %v127 = vld [vmem:[#allocation6 + $0x38] sm:$0xff]
    %v128 = vld [vmem:[#allocation6 + $0x40] sm:$0xff]
    %v129 = vld [vmem:[#allocation6 + $0x48] sm:$0xff]
    %v130 = vld [vmem:[#allocation6 + $0x50] sm:$0xff]
    %v131 = vld [vmem:[#allocation6 + $0x58] sm:$0xff]
    %v132 = vld [vmem:[#allocation6 + $0x60] sm:$0xff]
    %v133 = vld [vmem:[#allocation6 + $0x68] sm:$0xff]
    %v134 = vld [vmem:[#allocation6 + $0x70] sm:$0xff]
    %v135 = vld [vmem:[#allocation6 + $0x78] sm:$0xff]
    %136 = vmatprep.subr.mxu0 0.0
    %137 = vmatpush1.msra.mxu0 %v120
    %138 = vmatprep.subr.mxu0 0.0
    %139 = vmatpush1.msra.mxu0 %v121
    %140 = vmatprep.subr.mxu0 0.0
    %141 = vmatpush1.msra.mxu0 %v122
    %142 = vmatprep.subr.mxu0 0.0
    %143 = vmatpush1.msra.mxu0 %v123
    %144 = vmatprep.subr.mxu0 0.0
    %145 = vmatpush1.msra.mxu0 %v124
    %146 = vmatprep.subr.mxu0 0.0
    %147 = vmatpush1.msra.mxu0 %v125
    %148 = vmatprep.subr.mxu0 0.0
    %149 = vmatpush1.msra.mxu0 %v126
    %150 = vmatprep.subr.mxu0 0.0
    %151 = vmatpush1.msra.mxu0 %v127
    %152 = vmatprep.subr.mxu0 0.0
    %153 = vmatpush1.msra.mxu0 %v128
    %154 = vmatprep.subr.mxu0 0.0
    %155 = vmatpush1.msra.mxu0 %v129
    %156 = vmatprep.subr.mxu0 0.0
    %157 = vmatpush1.msra.mxu0 %v130
    %158 = vmatprep.subr.mxu0 0.0
    %159 = vmatpush1.msra.mxu0 %v131
    %160 = vmatprep.subr.mxu0 0.0
    %161 = vmatpush1.msra.mxu0 %v132
    %162 = vmatprep.subr.mxu0 0.0
    %163 = vmatpush1.msra.mxu0 %v133
    %164 = vmatprep.subr.mxu0 0.0
    %165 = vmatpush1.msra.mxu0 %v134
    %166 = vmatprep.subr.mxu0 0.0
    %167 = vmatpush1.msra.mxu0 %v135
    %168 = vmatprep.subr.mxu0 0.0
    %169 = vmatpush1.msra.mxu0 0.0
    %170 = vmatprep.subr.mxu0 0.0
    %171 = vmatpush1.msra.mxu0 0.0
    %172 = vmatprep.subr.mxu0 0.0
    %173 = vmatpush1.msra.mxu0 0.0
    %174 = vmatprep.subr.mxu0 0.0
    %175 = vmatpush1.msra.mxu0 0.0
    %176 = vmatprep.subr.mxu0 0.0
    %177 = vmatpush1.msra.mxu0 0.0
    %178 = vmatprep.subr.mxu0 0.0
    %179 = vmatpush1.msra.mxu0 0.0
    %180 = vmatprep.subr.mxu0 0.0
    %181 = vmatpush1.msra.mxu0 0.0
    %182 = vmatprep.subr.mxu0 0.0
    %183 = vmatpush1.msra.mxu0 0.0
    %184 = vmatprep.subr.mxu0 0.0
    %185 = vmatpush1.msra.mxu0 0.0
    %186 = vmatprep.subr.mxu0 0.0
    %187 = vmatpush1.msra.mxu0 0.0
    %188 = vmatprep.subr.mxu0 0.0
    %189 = vmatpush1.msra.mxu0 0.0
    %190 = vmatprep.subr.mxu0 0.0
    %191 = vmatpush1.msra.mxu0 0.0
    %192 = vmatprep.subr.mxu0 0.0
    %193 = vmatpush1.msra.mxu0 0.0
    %194 = vmatprep.subr.mxu0 0.0
    %195 = vmatpush1.msra.mxu0 0.0
    %196 = vmatprep.subr.mxu0 0.0
    %197 = vmatpush1.msra.mxu0 0.0
    %198 = vmatprep.subr.mxu0 0.0
    %199 = vmatpush1.msra.mxu0 0.0
    %200 = vmatprep.mubr.f32.mxu0 0.0
    %201 = vmatmul.mubr.f32.gmra.mrb[0].mxu0 %v56
    %v202 = vpop.f32.mrb[0].mxu0
    %v203 = vadd.f32 0.0, %v202
    %v204 = vpop.f32.mrb[0].mxu0
    %205 = vmatprep.mubr.f32.mxu0 0.0
    %206 = vmatmul.mubr.f32.gmra.mrb[0].mxu0 %v57
    %v207 = vpop.f32.mrb[0].mxu0
    %v208 = vadd.f32 0.0, %v207
    %v209 = vpop.f32.mrb[0].mxu0
    %210 = vmatprep.mubr.f32.mxu0 0.0
    %211 = vmatmul.mubr.f32.gmra.mrb[0].mxu0 %v58
    %v212 = vpop.f32.mrb[0].mxu0
    %v213 = vadd.f32 0.0, %v212
    %v214 = vpop.f32.mrb[0].mxu0
    %215 = vmatprep.mubr.f32.mxu0 0.0
    %216 = vmatmul.mubr.f32.gmra.mrb[0].mxu0 %v59
    %v217 = vpop.f32.mrb[0].mxu0
    %v218 = vadd.f32 0.0, %v217
    %v219 = vpop.f32.mrb[0].mxu0
    %220 = vmatprep.mubr.f32.mxu0 0.0
    %221 = vmatmul.mubr.f32.gmra.mrb[0].mxu0 %v60
    %v222 = vpop.f32.mrb[0].mxu0
    %v223 = vadd.f32 0.0, %v222
    %v224 = vpop.f32.mrb[0].mxu0
    %225 = vmatprep.mubr.f32.mxu0 0.0
    %226 = vmatmul.mubr.f32.gmra.mrb[0].mxu0 %v61
    %v227 = vpop.f32.mrb[0].mxu0
    %v228 = vadd.f32 0.0, %v227
    %v229 = vpop.f32.mrb[0].mxu0
    %230 = vmatprep.mubr.f32.mxu0 0.0
    %231 = vmatmul.mubr.f32.gmra.mrb[0].mxu0 %v62
    %v232 = vpop.f32.mrb[0].mxu0
    %v233 = vadd.f32 0.0, %v232
    %v234 = vpop.f32.mrb[0].mxu0
    %235 = vmatprep.mubr.f32.mxu0 0.0
    %236 = vmatmul.mubr.f32.gmra.mrb[0].mxu0 %v63
    %v237 = vpop.f32.mrb[0].mxu0
    %v238 = vadd.f32 0.0, %v237
    %v239 = vpop.f32.mrb[0].mxu0
    %240 = vmatprep.mubr.f32.mxu0 0.0
    %241 = vmatmul.mubr.f32.gmra.mrb[0].mxu0 %v64
    %v242 = vpop.f32.mrb[0].mxu0
    %v243 = vadd.f32 0.0, %v242
    %v244 = vpop.f32.mrb[0].mxu0
    %245 = vmatprep.mubr.f32.mxu0 0.0
    %246 = vmatmul.mubr.f32.gmra.mrb[0].mxu0 %v65
    %v247 = vpop.f32.mrb[0].mxu0
    %v248 = vadd.f32 0.0, %v247
    %v249 = vpop.f32.mrb[0].mxu0
    %250 = vmatprep.mubr.f32.mxu0 0.0
    %251 = vmatmul.mubr.f32.gmra.mrb[0].mxu0 %v66
    %v252 = vpop.f32.mrb[0].mxu0
    %v253 = vadd.f32 0.0, %v252
    %v254 = vpop.f32.mrb[0].mxu0
    %255 = vmatprep.mubr.f32.mxu0 0.0
    %256 = vmatmul.mubr.f32.gmra.mrb[0].mxu0 %v67
    %v257 = vpop.f32.mrb[0].mxu0
    %v258 = vadd.f32 0.0, %v257
    %v259 = vpop.f32.mrb[0].mxu0
    %260 = vmatprep.mubr.f32.mxu0 0.0
    %261 = vmatmul.mubr.f32.gmra.mrb[0].mxu0 %v68
    %v262 = vpop.f32.mrb[0].mxu0
    %v263 = vadd.f32 0.0, %v262
    %v264 = vpop.f32.mrb[0].mxu0
    %265 = vmatprep.mubr.f32.mxu0 0.0
    %266 = vmatmul.mubr.f32.gmra.mrb[0].mxu0 %v69
    %v267 = vpop.f32.mrb[0].mxu0
    %v268 = vadd.f32 0.0, %v267
    %v269 = vpop.f32.mrb[0].mxu0
    %270 = vmatprep.mubr.f32.mxu0 0.0
    %271 = vmatmul.mubr.f32.gmra.mrb[0].mxu0 %v70
    %v272 = vpop.f32.mrb[0].mxu0
    %v273 = vadd.f32 0.0, %v272
    %v274 = vpop.f32.mrb[0].mxu0
    %275 = vmatprep.mubr.f32.mxu0 0.0
    %276 = vmatmul.mubr.f32.gmra.mrb[0].mxu0 %v71
    %v277 = vpop.f32.mrb[0].mxu0
    %v278 = vadd.f32 0.0, %v277
    %v279 = vpop.f32.mrb[0].mxu0
    %280 = vmatprep.mubr.f32.mxu0 0.0
    %281 = vmatmul.mubr.f32.gmra.mrb[0].mxu0 %v72
    %v282 = vpop.f32.mrb[0].mxu0
    %v283 = vadd.f32 0.0, %v282
    %v284 = vpop.f32.mrb[0].mxu0
    %285 = vmatprep.mubr.f32.mxu0 0.0
    %286 = vmatmul.mubr.f32.gmra.mrb[0].mxu0 %v73
    %v287 = vpop.f32.mrb[0].mxu0
    %v288 = vadd.f32 0.0, %v287
    %v289 = vpop.f32.mrb[0].mxu0
    %290 = vmatprep.mubr.f32.mxu0 0.0
    %291 = vmatmul.mubr.f32.gmra.mrb[0].mxu0 %v74
    %v292 = vpop.f32.mrb[0].mxu0
    %v293 = vadd.f32 0.0, %v292
    %v294 = vpop.f32.mrb[0].mxu0
    %295 = vmatprep.mubr.f32.mxu0 0.0
    %296 = vmatmul.mubr.f32.gmra.mrb[0].mxu0 %v75
    %v297 = vpop.f32.mrb[0].mxu0
    %v298 = vadd.f32 0.0, %v297
    %v299 = vpop.f32.mrb[0].mxu0
    %300 = vmatprep.mubr.f32.mxu0 0.0
    %301 = vmatmul.mubr.f32.gmra.mrb[0].mxu0 %v76
    %v302 = vpop.f32.mrb[0].mxu0
    %v303 = vadd.f32 0.0, %v302
    %v304 = vpop.f32.mrb[0].mxu0
    %305 = vmatprep.mubr.f32.mxu0 0.0
    %306 = vmatmul.mubr.f32.gmra.mrb[0].mxu0 %v77
    %v307 = vpop.f32.mrb[0].mxu0
    %v308 = vadd.f32 0.0, %v307
    %v309 = vpop.f32.mrb[0].mxu0
    %310 = vmatprep.mubr.f32.mxu0 0.0
    %311 = vmatmul.mubr.f32.gmra.mrb[0].mxu0 %v78
    %v312 = vpop.f32.mrb[0].mxu0
    %v313 = vadd.f32 0.0, %v312
    %v314 = vpop.f32.mrb[0].mxu0
    %315 = vmatprep.mubr.f32.mxu0 0.0
    %316 = vmatmul.mubr.f32.gmra.mrb[0].mxu0 %v79
    %v317 = vpop.f32.mrb[0].mxu0
    %v318 = vadd.f32 0.0, %v317
    %v319 = vpop.f32.mrb[0].mxu0
    %320 = vmatprep.mubr.f32.mxu0 0.0
    %321 = vmatmul.mubr.f32.gmra.mrb[0].mxu0 %v80
    %v322 = vpop.f32.mrb[0].mxu0
    %v323 = vadd.f32 0.0, %v322
    %v324 = vpop.f32.mrb[0].mxu0
    %325 = vmatprep.mubr.f32.mxu0 0.0
    %326 = vmatmul.mubr.f32.gmra.mrb[0].mxu0 %v81
    %v327 = vpop.f32.mrb[0].mxu0
    %v328 = vadd.f32 0.0, %v327
    %v329 = vpop.f32.mrb[0].mxu0
    %330 = vmatprep.mubr.f32.mxu0 0.0
    %331 = vmatmul.mubr.f32.gmra.mrb[0].mxu0 %v82
    %v332 = vpop.f32.mrb[0].mxu0
    %v333 = vadd.f32 0.0, %v332
    %v334 = vpop.f32.mrb[0].mxu0
    %335 = vmatprep.mubr.f32.mxu0 0.0
    %336 = vmatmul.mubr.f32.gmra.mrb[0].mxu0 %v83
    %v337 = vpop.f32.mrb[0].mxu0
    %v338 = vadd.f32 0.0, %v337
    %v339 = vpop.f32.mrb[0].mxu0
    %340 = vmatprep.mubr.f32.mxu0 0.0
    %341 = vmatmul.mubr.f32.gmra.mrb[0].mxu0 %v84
    %v342 = vpop.f32.mrb[0].mxu0
    %v343 = vadd.f32 0.0, %v342
    %v344 = vpop.f32.mrb[0].mxu0
    %345 = vmatprep.mubr.f32.mxu0 0.0
    %346 = vmatmul.mubr.f32.gmra.mrb[0].mxu0 %v85
    %v347 = vpop.f32.mrb[0].mxu0
    %v348 = vadd.f32 0.0, %v347
    %v349 = vpop.f32.mrb[0].mxu0
    %350 = vmatprep.mubr.f32.mxu0 0.0
    %351 = vmatmul.mubr.f32.gmra.mrb[0].mxu0 %v86
    %v352 = vpop.f32.mrb[0].mxu0
    %v353 = vadd.f32 0.0, %v352
    %v354 = vpop.f32.mrb[0].mxu0
    %355 = vmatprep.mubr.f32.mxu0 0.0
    %356 = vmatmul.mubr.f32.gmra.mrb[0].mxu0 %v87
    %v357 = vpop.f32.mrb[0].mxu0
    %v358 = vadd.f32 0.0, %v357
    %v359 = vpop.f32.mrb[0].mxu0
    %360 = vmatprep.mubr.f32.mxu0 0.0
    %361 = vmatmul.mubr.f32.gmra.mrb[0].mxu0 %v88
    %v362 = vpop.f32.mrb[0].mxu0
    %v363 = vadd.f32 0.0, %v362
    %v364 = vpop.f32.mrb[0].mxu0
    %365 = vmatprep.mubr.f32.mxu0 0.0
    %366 = vmatmul.mubr.f32.gmra.mrb[0].mxu0 %v89
    %v367 = vpop.f32.mrb[0].mxu0
    %v368 = vadd.f32 0.0, %v367
    %v369 = vpop.f32.mrb[0].mxu0
    %370 = vmatprep.mubr.f32.mxu0 0.0
    %371 = vmatmul.mubr.f32.gmra.mrb[0].mxu0 %v90
    %v372 = vpop.f32.mrb[0].mxu0
    %v373 = vadd.f32 0.0, %v372
    %v374 = vpop.f32.mrb[0].mxu0
    %375 = vmatprep.mubr.f32.mxu0 0.0
    %376 = vmatmul.mubr.f32.gmra.mrb[0].mxu0 %v91
    %v377 = vpop.f32.mrb[0].mxu0
    %v378 = vadd.f32 0.0, %v377
    %v379 = vpop.f32.mrb[0].mxu0
    %380 = vmatprep.mubr.f32.mxu0 0.0
    %381 = vmatmul.mubr.f32.gmra.mrb[0].mxu0 %v92
    %v382 = vpop.f32.mrb[0].mxu0
    %v383 = vadd.f32 0.0, %v382
    %v384 = vpop.f32.mrb[0].mxu0
    %385 = vmatprep.mubr.f32.mxu0 0.0
    %386 = vmatmul.mubr.f32.gmra.mrb[0].mxu0 %v93
    %v387 = vpop.f32.mrb[0].mxu0
    %v388 = vadd.f32 0.0, %v387
    %v389 = vpop.f32.mrb[0].mxu0
    %390 = vmatprep.mubr.f32.mxu0 0.0
    %391 = vmatmul.mubr.f32.gmra.mrb[0].mxu0 %v94
    %v392 = vpop.f32.mrb[0].mxu0
    %v393 = vadd.f32 0.0, %v392
    %v394 = vpop.f32.mrb[0].mxu0
    %395 = vmatprep.mubr.f32.mxu0 0.0
    %396 = vmatmul.mubr.f32.gmra.mrb[0].mxu0 %v95
    %v397 = vpop.f32.mrb[0].mxu0
    %v398 = vadd.f32 0.0, %v397
    %v399 = vpop.f32.mrb[0].mxu0
    %400 = vmatprep.mubr.f32.mxu0 0.0
    %401 = vmatmul.mubr.f32.gmra.mrb[0].mxu0 %v96
    %v402 = vpop.f32.mrb[0].mxu0
    %v403 = vadd.f32 0.0, %v402
    %v404 = vpop.f32.mrb[0].mxu0
    %405 = vmatprep.mubr.f32.mxu0 0.0
    %406 = vmatmul.mubr.f32.gmra.mrb[0].mxu0 %v97
    %v407 = vpop.f32.mrb[0].mxu0
    %v408 = vadd.f32 0.0, %v407
    %v409 = vpop.f32.mrb[0].mxu0
    %410 = vmatprep.mubr.f32.mxu0 0.0
    %411 = vmatmul.mubr.f32.gmra.mrb[0].mxu0 %v98
    %v412 = vpop.f32.mrb[0].mxu0
    %v413 = vadd.f32 0.0, %v412
    %v414 = vpop.f32.mrb[0].mxu0
    %415 = vmatprep.mubr.f32.mxu0 0.0
    %416 = vmatmul.mubr.f32.gmra.mrb[0].mxu0 %v99
    %v417 = vpop.f32.mrb[0].mxu0
    %v418 = vadd.f32 0.0, %v417
    %v419 = vpop.f32.mrb[0].mxu0
    %420 = vmatprep.mubr.f32.mxu0 0.0
    %421 = vmatmul.mubr.f32.gmra.mrb[0].mxu0 %v100
    %v422 = vpop.f32.mrb[0].mxu0
    %v423 = vadd.f32 0.0, %v422
    %v424 = vpop.f32.mrb[0].mxu0
    %425 = vmatprep.mubr.f32.mxu0 0.0
    %426 = vmatmul.mubr.f32.gmra.mrb[0].mxu0 %v101
    %v427 = vpop.f32.mrb[0].mxu0
    %v428 = vadd.f32 0.0, %v427
    %v429 = vpop.f32.mrb[0].mxu0
    %430 = vmatprep.mubr.f32.mxu0 0.0
    %431 = vmatmul.mubr.f32.gmra.mrb[0].mxu0 %v102
    %v432 = vpop.f32.mrb[0].mxu0
    %v433 = vadd.f32 0.0, %v432
    %v434 = vpop.f32.mrb[0].mxu0
    %435 = vmatprep.mubr.f32.mxu0 0.0
    %436 = vmatmul.mubr.f32.gmra.mrb[0].mxu0 %v103
    %v437 = vpop.f32.mrb[0].mxu0
    %v438 = vadd.f32 0.0, %v437
    %v439 = vpop.f32.mrb[0].mxu0
    %440 = vmatprep.mubr.f32.mxu0 0.0
    %441 = vmatmul.mubr.f32.gmra.mrb[0].mxu0 %v104
    %v442 = vpop.f32.mrb[0].mxu0
    %v443 = vadd.f32 0.0, %v442
    %v444 = vpop.f32.mrb[0].mxu0
    %445 = vmatprep.mubr.f32.mxu0 0.0
    %446 = vmatmul.mubr.f32.gmra.mrb[0].mxu0 %v105
    %v447 = vpop.f32.mrb[0].mxu0
    %v448 = vadd.f32 0.0, %v447
    %v449 = vpop.f32.mrb[0].mxu0
    %450 = vmatprep.mubr.f32.mxu0 0.0
    %451 = vmatmul.mubr.f32.gmra.mrb[0].mxu0 %v106
    %v452 = vpop.f32.mrb[0].mxu0
    %v453 = vadd.f32 0.0, %v452
    %v454 = vpop.f32.mrb[0].mxu0
    %455 = vmatprep.mubr.f32.mxu0 0.0
    %456 = vmatmul.mubr.f32.gmra.mrb[0].mxu0 %v107
    %v457 = vpop.f32.mrb[0].mxu0
    %v458 = vadd.f32 0.0, %v457
    %v459 = vpop.f32.mrb[0].mxu0
    %460 = vmatprep.mubr.f32.mxu0 0.0
    %461 = vmatmul.mubr.f32.gmra.mrb[0].mxu0 %v108
    %v462 = vpop.f32.mrb[0].mxu0
    %v463 = vadd.f32 0.0, %v462
    %v464 = vpop.f32.mrb[0].mxu0
    %465 = vmatprep.mubr.f32.mxu0 0.0
    %466 = vmatmul.mubr.f32.gmra.mrb[0].mxu0 %v109
    %v467 = vpop.f32.mrb[0].mxu0
    %v468 = vadd.f32 0.0, %v467
    %v469 = vpop.f32.mrb[0].mxu0
    %470 = vmatprep.mubr.f32.mxu0 0.0
    %471 = vmatmul.mubr.f32.gmra.mrb[0].mxu0 %v110
    %v472 = vpop.f32.mrb[0].mxu0
    %v473 = vadd.f32 0.0, %v472
    %v474 = vpop.f32.mrb[0].mxu0
    %475 = vmatprep.mubr.f32.mxu0 0.0
    %476 = vmatmul.mubr.f32.gmra.mrb[0].mxu0 %v111
    %v477 = vpop.f32.mrb[0].mxu0
    %v478 = vadd.f32 0.0, %v477
    %v479 = vpop.f32.mrb[0].mxu0
    %480 = vmatprep.mubr.f32.mxu0 0.0
    %481 = vmatmul.mubr.f32.gmra.mrb[0].mxu0 %v112
    %v482 = vpop.f32.mrb[0].mxu0
    %v483 = vadd.f32 0.0, %v482
    %v484 = vpop.f32.mrb[0].mxu0
    %485 = vmatprep.mubr.f32.mxu0 0.0
    %486 = vmatmul.mubr.f32.gmra.mrb[0].mxu0 %v113
    %v487 = vpop.f32.mrb[0].mxu0
    %v488 = vadd.f32 0.0, %v487
    %v489 = vpop.f32.mrb[0].mxu0
    %490 = vmatprep.mubr.f32.mxu0 0.0
    %491 = vmatmul.mubr.f32.gmra.mrb[0].mxu0 %v114
    %v492 = vpop.f32.mrb[0].mxu0
    %v493 = vadd.f32 0.0, %v492
    %v494 = vpop.f32.mrb[0].mxu0
    %495 = vmatprep.mubr.f32.mxu0 0.0
    %496 = vmatmul.mubr.f32.gmra.mrb[0].mxu0 %v115
    %v497 = vpop.f32.mrb[0].mxu0
    %v498 = vadd.f32 0.0, %v497
    %v499 = vpop.f32.mrb[0].mxu0
    %500 = vmatprep.mubr.f32.mxu0 0.0
    %501 = vmatmul.mubr.f32.gmra.mrb[0].mxu0 %v116
    %v502 = vpop.f32.mrb[0].mxu0
    %v503 = vadd.f32 0.0, %v502
    %v504 = vpop.f32.mrb[0].mxu0
    %505 = vmatprep.mubr.f32.mxu0 0.0
    %506 = vmatmul.mubr.f32.gmra.mrb[0].mxu0 %v117
    %v507 = vpop.f32.mrb[0].mxu0
    %v508 = vadd.f32 0.0, %v507
    %v509 = vpop.f32.mrb[0].mxu0
    %510 = vmatprep.mubr.f32.mxu0 0.0
    %511 = vmatmul.mubr.f32.gmra.mrb[0].mxu0 %v118
    %v512 = vpop.f32.mrb[0].mxu0
    %v513 = vadd.f32 0.0, %v512
    %v514 = vpop.f32.mrb[0].mxu0
    %515 = vmatprep.mubr.f32.mxu0 0.0
    %516 = vmatmul.mubr.f32.gmra.mrb[0].mxu0 %v119
    %v517 = vpop.f32.mrb[0].mxu0
    %v518 = vadd.f32 0.0, %v517
    %v519 = vpop.f32.mrb[0].mxu0
    %520 = vdwg.mxu0
    %521 = vst [vmem:[#allocation2] sm:$0xff] %v203
    %522 = vst [vmem:[#allocation2 + $0x8] sm:$0xff] %v208
    %523 = vst [vmem:[#allocation2 + $0x10] sm:$0xff] %v213
    %524 = vst [vmem:[#allocation2 + $0x18] sm:$0xff] %v218
    %525 = vst [vmem:[#allocation2 + $0x20] sm:$0xff] %v223
    %526 = vst [vmem:[#allocation2 + $0x28] sm:$0xff] %v228
    %527 = vst [vmem:[#allocation2 + $0x30] sm:$0xff] %v233
    %528 = vst [vmem:[#allocation2 + $0x38] sm:$0xff] %v238
    %529 = vst [vmem:[#allocation2 + $0x40] sm:$0xff] %v243
    %530 = vst [vmem:[#allocation2 + $0x48] sm:$0xff] %v248
    %531 = vst [vmem:[#allocation2 + $0x50] sm:$0xff] %v253
    %532 = vst [vmem:[#allocation2 + $0x58] sm:$0xff] %v258
    %533 = vst [vmem:[#allocation2 + $0x60] sm:$0xff] %v263
    %534 = vst [vmem:[#allocation2 + $0x68] sm:$0xff] %v268
    %535 = vst [vmem:[#allocation2 + $0x70] sm:$0xff] %v273
    %536 = vst [vmem:[#allocation2 + $0x78] sm:$0xff] %v278
    %537 = vst [vmem:[#allocation2 + $0x80] sm:$0xff] %v283
    %538 = vst [vmem:[#allocation2 + $0x88] sm:$0xff] %v288
    %539 = vst [vmem:[#allocation2 + $0x90] sm:$0xff] %v293
    %540 = vst [vmem:[#allocation2 + $0x98] sm:$0xff] %v298
    %541 = vst [vmem:[#allocation2 + $0xa0] sm:$0xff] %v303
    %542 = vst [vmem:[#allocation2 + $0xa8] sm:$0xff] %v308
    %543 = vst [vmem:[#allocation2 + $0xb0] sm:$0xff] %v313
    %544 = vst [vmem:[#allocation2 + $0xb8] sm:$0xff] %v318
    %545 = vst [vmem:[#allocation2 + $0xc0] sm:$0xff] %v323
    %546 = vst [vmem:[#allocation2 + $0xc8] sm:$0xff] %v328
    %547 = vst [vmem:[#allocation2 + $0xd0] sm:$0xff] %v333
    %548 = vst [vmem:[#allocation2 + $0xd8] sm:$0xff] %v338
    %549 = vst [vmem:[#allocation2 + $0xe0] sm:$0xff] %v343
    %550 = vst [vmem:[#allocation2 + $0xe8] sm:$0xff] %v348
    %551 = vst [vmem:[#allocation2 + $0xf0] sm:$0xff] %v353
    %552 = vst [vmem:[#allocation2 + $0xf8] sm:$0xff] %v358
    %553 = vst [vmem:[#allocation2 + $0x100] sm:$0xff] %v363
    %554 = vst [vmem:[#allocation2 + $0x108] sm:$0xff] %v368
    %555 = vst [vmem:[#allocation2 + $0x110] sm:$0xff] %v373
    %556 = vst [vmem:[#allocation2 + $0x118] sm:$0xff] %v378
    %557 = vst [vmem:[#allocation2 + $0x120] sm:$0xff] %v383
    %558 = vst [vmem:[#allocation2 + $0x128] sm:$0xff] %v388
    %559 = vst [vmem:[#allocation2 + $0x130] sm:$0xff] %v393
    %560 = vst [vmem:[#allocation2 + $0x138] sm:$0xff] %v398
    %561 = vst [vmem:[#allocation2 + $0x140] sm:$0xff] %v403
    %562 = vst [vmem:[#allocation2 + $0x148] sm:$0xff] %v408
    %563 = vst [vmem:[#allocation2 + $0x150] sm:$0xff] %v413
    %564 = vst [vmem:[#allocation2 + $0x158] sm:$0xff] %v418
    %565 = vst [vmem:[#allocation2 + $0x160] sm:$0xff] %v423
    %566 = vst [vmem:[#allocation2 + $0x168] sm:$0xff] %v428
    %567 = vst [vmem:[#allocation2 + $0x170] sm:$0xff] %v433
    %568 = vst [vmem:[#allocation2 + $0x178] sm:$0xff] %v438
    %569 = vst [vmem:[#allocation2 + $0x180] sm:$0xff] %v443
    %570 = vst [vmem:[#allocation2 + $0x188] sm:$0xff] %v448
    %571 = vst [vmem:[#allocation2 + $0x190] sm:$0xff] %v453
    %572 = vst [vmem:[#allocation2 + $0x198] sm:$0xff] %v458
    %573 = vst [vmem:[#allocation2 + $0x1a0] sm:$0xff] %v463
    %574 = vst [vmem:[#allocation2 + $0x1a8] sm:$0xff] %v468
    %575 = vst [vmem:[#allocation2 + $0x1b0] sm:$0xff] %v473
    %576 = vst [vmem:[#allocation2 + $0x1b8] sm:$0xff] %v478
    %577 = vst [vmem:[#allocation2 + $0x1c0] sm:$0xff] %v483
    %578 = vst [vmem:[#allocation2 + $0x1c8] sm:$0xff] %v488
    %579 = vst [vmem:[#allocation2 + $0x1d0] sm:$0xff] %v493
    %580 = vst [vmem:[#allocation2 + $0x1d8] sm:$0xff] %v498
    %581 = vst [vmem:[#allocation2 + $0x1e0] sm:$0xff] %v503
    %582 = vst [vmem:[#allocation2 + $0x1e8] sm:$0xff] %v508
    %583 = vst [vmem:[#allocation2 + $0x1f0] sm:$0xff] %v513
    %584 = vst [vmem:[#allocation2 + $0x1f8] sm:$0xff] %v518
    %v585 = vld [vmem:[#allocation8] sm:$0xff]
    %v586 = vld [vmem:[#allocation8 + $0x8] sm:$0xff]
    %v587 = vld [vmem:[#allocation8 + $0x10] sm:$0xff]
    %v588 = vld [vmem:[#allocation8 + $0x18] sm:$0xff]
    %v589 = vld [vmem:[#allocation8 + $0x20] sm:$0xff]
    %v590 = vld [vmem:[#allocation8 + $0x28] sm:$0xff]
    %v591 = vld [vmem:[#allocation8 + $0x30] sm:$0xff]
    %v592 = vld [vmem:[#allocation8 + $0x38] sm:$0xff]
    %v593 = vld [vmem:[#allocation8 + $0x40] sm:$0xff]
    %v594 = vld [vmem:[#allocation8 + $0x48] sm:$0xff]
    %v595 = vld [vmem:[#allocation8 + $0x50] sm:$0xff]
    %v596 = vld [vmem:[#allocation8 + $0x58] sm:$0xff]
    %v597 = vld [vmem:[#allocation8 + $0x60] sm:$0xff]
    %v598 = vld [vmem:[#allocation8 + $0x68] sm:$0xff]
    %v599 = vld [vmem:[#allocation8 + $0x70] sm:$0xff]
    %v600 = vld [vmem:[#allocation8 + $0x78] sm:$0xff]
    %v601 = vld [vmem:[#allocation8 + $0x80] sm:$0xff]
    %v602 = vld [vmem:[#allocation8 + $0x88] sm:$0xff]
    %v603 = vld [vmem:[#allocation8 + $0x90] sm:$0xff]
    %v604 = vld [vmem:[#allocation8 + $0x98] sm:$0xff]
    %v605 = vld [vmem:[#allocation8 + $0xa0] sm:$0xff]
    %v606 = vld [vmem:[#allocation8 + $0xa8] sm:$0xff]
    %v607 = vld [vmem:[#allocation8 + $0xb0] sm:$0xff]
    %v608 = vld [vmem:[#allocation8 + $0xb8] sm:$0xff]
    %v609 = vld [vmem:[#allocation8 + $0xc0] sm:$0xff]
    %v610 = vld [vmem:[#allocation8 + $0xc8] sm:$0xff]
    %v611 = vld [vmem:[#allocation8 + $0xd0] sm:$0xff]
    %v612 = vld [vmem:[#allocation8 + $0xd8] sm:$0xff]
    %v613 = vld [vmem:[#allocation8 + $0xe0] sm:$0xff]
    %v614 = vld [vmem:[#allocation8 + $0xe8] sm:$0xff]
    %v615 = vld [vmem:[#allocation8 + $0xf0] sm:$0xff]
    %v616 = vld [vmem:[#allocation8 + $0xf8] sm:$0xff]
    %v617 = vld [vmem:[#allocation8 + $0x100] sm:$0xff]
    %v618 = vld [vmem:[#allocation8 + $0x108] sm:$0xff]
    %v619 = vld [vmem:[#allocation8 + $0x110] sm:$0xff]
    %v620 = vld [vmem:[#allocation8 + $0x118] sm:$0xff]
    %v621 = vld [vmem:[#allocation8 + $0x120] sm:$0xff]
    %v622 = vld [vmem:[#allocation8 + $0x128] sm:$0xff]
    %v623 = vld [vmem:[#allocation8 + $0x130] sm:$0xff]
    %v624 = vld [vmem:[#allocation8 + $0x138] sm:$0xff]
    %v625 = vld [vmem:[#allocation8 + $0x140] sm:$0xff]
    %v626 = vld [vmem:[#allocation8 + $0x148] sm:$0xff]
    %v627 = vld [vmem:[#allocation8 + $0x150] sm:$0xff]
    %v628 = vld [vmem:[#allocation8 + $0x158] sm:$0xff]
    %v629 = vld [vmem:[#allocation8 + $0x160] sm:$0xff]
    %v630 = vld [vmem:[#allocation8 + $0x168] sm:$0xff]
    %v631 = vld [vmem:[#allocation8 + $0x170] sm:$0xff]
    %v632 = vld [vmem:[#allocation8 + $0x178] sm:$0xff]
    %v633 = vld [vmem:[#allocation8 + $0x180] sm:$0xff]
    %v634 = vld [vmem:[#allocation8 + $0x188] sm:$0xff]
    %v635 = vld [vmem:[#allocation8 + $0x190] sm:$0xff]
    %v636 = vld [vmem:[#allocation8 + $0x198] sm:$0xff]
    %v637 = vld [vmem:[#allocation8 + $0x1a0] sm:$0xff]
    %v638 = vld [vmem:[#allocation8 + $0x1a8] sm:$0xff]
    %v639 = vld [vmem:[#allocation8 + $0x1b0] sm:$0xff]
    %v640 = vld [vmem:[#allocation8 + $0x1b8] sm:$0xff]
    %v641 = vld [vmem:[#allocation8 + $0x1c0] sm:$0xff]
    %v642 = vld [vmem:[#allocation8 + $0x1c8] sm:$0xff]
    %v643 = vld [vmem:[#allocation8 + $0x1d0] sm:$0xff]
    %v644 = vld [vmem:[#allocation8 + $0x1d8] sm:$0xff]
    %v645 = vld [vmem:[#allocation8 + $0x1e0] sm:$0xff]
    %v646 = vld [vmem:[#allocation8 + $0x1e8] sm:$0xff]
    %v647 = vld [vmem:[#allocation8 + $0x1f0] sm:$0xff]
    %v648 = vld [vmem:[#allocation8 + $0x1f8] sm:$0xff]
    %v649 = vld [vmem:[#allocation8 + $0x200] sm:$0xff]
    %v650 = vld [vmem:[#allocation8 + $0x208] sm:$0xff]
    %v651 = vld [vmem:[#allocation8 + $0x210] sm:$0xff]
    %v652 = vld [vmem:[#allocation8 + $0x218] sm:$0xff]
    %v653 = vld [vmem:[#allocation8 + $0x220] sm:$0xff]
    %v654 = vld [vmem:[#allocation8 + $0x228] sm:$0xff]
    %v655 = vld [vmem:[#allocation8 + $0x230] sm:$0xff]
    %v656 = vld [vmem:[#allocation8 + $0x238] sm:$0xff]
    %v657 = vld [vmem:[#allocation8 + $0x240] sm:$0xff]
    %v658 = vld [vmem:[#allocation8 + $0x248] sm:$0xff]
    %v659 = vld [vmem:[#allocation8 + $0x250] sm:$0xff]
    %v660 = vld [vmem:[#allocation8 + $0x258] sm:$0xff]
    %v661 = vld [vmem:[#allocation8 + $0x260] sm:$0xff]
    %v662 = vld [vmem:[#allocation8 + $0x268] sm:$0xff]
    %v663 = vld [vmem:[#allocation8 + $0x270] sm:$0xff]
    %v664 = vld [vmem:[#allocation8 + $0x278] sm:$0xff]
    %v665 = vld [vmem:[#allocation8 + $0x280] sm:$0xff]
    %v666 = vld [vmem:[#allocation8 + $0x288] sm:$0xff]
    %v667 = vld [vmem:[#allocation8 + $0x290] sm:$0xff]
    %v668 = vld [vmem:[#allocation8 + $0x298] sm:$0xff]
    %v669 = vld [vmem:[#allocation8 + $0x2a0] sm:$0xff]
    %v670 = vld [vmem:[#allocation8 + $0x2a8] sm:$0xff]
    %v671 = vld [vmem:[#allocation8 + $0x2b0] sm:$0xff]
    %v672 = vld [vmem:[#allocation8 + $0x2b8] sm:$0xff]
    %v673 = vld [vmem:[#allocation8 + $0x2c0] sm:$0xff]
    %v674 = vld [vmem:[#allocation8 + $0x2c8] sm:$0xff]
    %v675 = vld [vmem:[#allocation8 + $0x2d0] sm:$0xff]
    %v676 = vld [vmem:[#allocation8 + $0x2d8] sm:$0xff]
    %v677 = vld [vmem:[#allocation8 + $0x2e0] sm:$0xff]
    %v678 = vld [vmem:[#allocation8 + $0x2e8] sm:$0xff]
    %v679 = vld [vmem:[#allocation8 + $0x2f0] sm:$0xff]
    %v680 = vld [vmem:[#allocation8 + $0x2f8] sm:$0xff]
    %v681 = vld [vmem:[#allocation8 + $0x300] sm:$0xff]
    %v682 = vld [vmem:[#allocation8 + $0x308] sm:$0xff]
    %v683 = vld [vmem:[#allocation8 + $0x310] sm:$0xff]
    %v684 = vld [vmem:[#allocation8 + $0x318] sm:$0xff]
    %v685 = vld [vmem:[#allocation8 + $0x320] sm:$0xff]
    %v686 = vld [vmem:[#allocation8 + $0x328] sm:$0xff]
    %v687 = vld [vmem:[#allocation8 + $0x330] sm:$0xff]
    %v688 = vld [vmem:[#allocation8 + $0x338] sm:$0xff]
    %v689 = vld [vmem:[#allocation8 + $0x340] sm:$0xff]
    %v690 = vld [vmem:[#allocation8 + $0x348] sm:$0xff]
    %v691 = vld [vmem:[#allocation8 + $0x350] sm:$0xff]
    %v692 = vld [vmem:[#allocation8 + $0x358] sm:$0xff]
    %v693 = vld [vmem:[#allocation8 + $0x360] sm:$0xff]
    %v694 = vld [vmem:[#allocation8 + $0x368] sm:$0xff]
    %v695 = vld [vmem:[#allocation8 + $0x370] sm:$0xff]
    %v696 = vld [vmem:[#allocation8 + $0x378] sm:$0xff]
    %v697 = vld [vmem:[#allocation8 + $0x380] sm:$0xff]
    %v698 = vld [vmem:[#allocation8 + $0x388] sm:$0xff]
    %v699 = vld [vmem:[#allocation8 + $0x390] sm:$0xff]
    %v700 = vld [vmem:[#allocation8 + $0x398] sm:$0xff]
    %v701 = vld [vmem:[#allocation8 + $0x3a0] sm:$0xff]
    %v702 = vld [vmem:[#allocation8 + $0x3a8] sm:$0xff]
    %v703 = vld [vmem:[#allocation8 + $0x3b0] sm:$0xff]
    %v704 = vld [vmem:[#allocation8 + $0x3b8] sm:$0xff]
    %v705 = vld [vmem:[#allocation8 + $0x3c0] sm:$0xff]
    %v706 = vld [vmem:[#allocation8 + $0x3c8] sm:$0xff]
    %v707 = vld [vmem:[#allocation8 + $0x3d0] sm:$0xff]
    %v708 = vld [vmem:[#allocation8 + $0x3d8] sm:$0xff]
    %v709 = vld [vmem:[#allocation8 + $0x3e0] sm:$0xff]
    %v710 = vld [vmem:[#allocation8 + $0x3e8] sm:$0xff]
    %v711 = vld [vmem:[#allocation8 + $0x3f0] sm:$0xff]
    %v712 = vld [vmem:[#allocation8 + $0x3f8] sm:$0xff]
    %v713 = vld [vmem:[#allocation8 + $0x400] sm:$0xff]
    %v714 = vld [vmem:[#allocation8 + $0x408] sm:$0xff]
    %v715 = vld [vmem:[#allocation8 + $0x410] sm:$0xff]
    %v716 = vld [vmem:[#allocation8 + $0x418] sm:$0xff]
    %v717 = vld [vmem:[#allocation8 + $0x420] sm:$0xff]
    %v718 = vld [vmem:[#allocation8 + $0x428] sm:$0xff]
    %v719 = vld [vmem:[#allocation8 + $0x430] sm:$0xff]
    %v720 = vld [vmem:[#allocation8 + $0x438] sm:$0xff]
    %v721 = vld [vmem:[#allocation8 + $0x440] sm:$0xff]
    %v722 = vld [vmem:[#allocation8 + $0x448] sm:$0xff]
    %v723 = vld [vmem:[#allocation8 + $0x450] sm:$0xff]
    %v724 = vld [vmem:[#allocation8 + $0x458] sm:$0xff]
    %v725 = vld [vmem:[#allocation8 + $0x460] sm:$0xff]
    %v726 = vld [vmem:[#allocation8 + $0x468] sm:$0xff]
    %v727 = vld [vmem:[#allocation8 + $0x470] sm:$0xff]
    %v728 = vld [vmem:[#allocation8 + $0x478] sm:$0xff]
    %v729 = vld [vmem:[#allocation8 + $0x480] sm:$0xff]
    %v730 = vld [vmem:[#allocation8 + $0x488] sm:$0xff]
    %v731 = vld [vmem:[#allocation8 + $0x490] sm:$0xff]
    %v732 = vld [vmem:[#allocation8 + $0x498] sm:$0xff]
    %v733 = vld [vmem:[#allocation8 + $0x4a0] sm:$0xff]
    %v734 = vld [vmem:[#allocation8 + $0x4a8] sm:$0xff]
    %v735 = vld [vmem:[#allocation8 + $0x4b0] sm:$0xff]
    %v736 = vld [vmem:[#allocation8 + $0x4b8] sm:$0xff]
    %v737 = vld [vmem:[#allocation8 + $0x4c0] sm:$0xff]
    %v738 = vld [vmem:[#allocation8 + $0x4c8] sm:$0xff]
    %v739 = vld [vmem:[#allocation8 + $0x4d0] sm:$0xff]
    %v740 = vld [vmem:[#allocation8 + $0x4d8] sm:$0xff]
    %v741 = vld [vmem:[#allocation8 + $0x4e0] sm:$0xff]
    %v742 = vld [vmem:[#allocation8 + $0x4e8] sm:$0xff]
    %v743 = vld [vmem:[#allocation8 + $0x4f0] sm:$0xff]
    %v744 = vld [vmem:[#allocation8 + $0x4f8] sm:$0xff]
    %v745 = vld [vmem:[#allocation8 + $0x500] sm:$0xff]
    %v746 = vld [vmem:[#allocation8 + $0x508] sm:$0xff]
    %v747 = vld [vmem:[#allocation8 + $0x510] sm:$0xff]
    %v748 = vld [vmem:[#allocation8 + $0x518] sm:$0xff]
    %v749 = vld [vmem:[#allocation8 + $0x520] sm:$0xff]
    %v750 = vld [vmem:[#allocation8 + $0x528] sm:$0xff]
    %v751 = vld [vmem:[#allocation8 + $0x530] sm:$0xff]
    %v752 = vld [vmem:[#allocation8 + $0x538] sm:$0xff]
    %v753 = vld [vmem:[#allocation8 + $0x540] sm:$0xff]
    %v754 = vld [vmem:[#allocation8 + $0x548] sm:$0xff]
    %v755 = vld [vmem:[#allocation8 + $0x550] sm:$0xff]
    %v756 = vld [vmem:[#allocation8 + $0x558] sm:$0xff]
    %v757 = vld [vmem:[#allocation8 + $0x560] sm:$0xff]
    %v758 = vld [vmem:[#allocation8 + $0x568] sm:$0xff]
    %v759 = vld [vmem:[#allocation8 + $0x570] sm:$0xff]
    %v760 = vld [vmem:[#allocation8 + $0x578] sm:$0xff]
    %v761 = vld [vmem:[#allocation8 + $0x580] sm:$0xff]
    %v762 = vld [vmem:[#allocation8 + $0x588] sm:$0xff]
    %v763 = vld [vmem:[#allocation8 + $0x590] sm:$0xff]
    %v764 = vld [vmem:[#allocation8 + $0x598] sm:$0xff]
    %v765 = vld [vmem:[#allocation8 + $0x5a0] sm:$0xff]
    %v766 = vld [vmem:[#allocation8 + $0x5a8] sm:$0xff]
    %v767 = vld [vmem:[#allocation8 + $0x5b0] sm:$0xff]
    %v768 = vld [vmem:[#allocation8 + $0x5b8] sm:$0xff]
    %v769 = vld [vmem:[#allocation8 + $0x5c0] sm:$0xff]
    %v770 = vld [vmem:[#allocation8 + $0x5c8] sm:$0xff]
    %v771 = vld [vmem:[#allocation8 + $0x5d0] sm:$0xff]
    %v772 = vld [vmem:[#allocation8 + $0x5d8] sm:$0xff]
    %v773 = vld [vmem:[#allocation8 + $0x5e0] sm:$0xff]
    %v774 = vld [vmem:[#allocation8 + $0x5e8] sm:$0xff]
    %v775 = vld [vmem:[#allocation8 + $0x5f0] sm:$0xff]
    %v776 = vld [vmem:[#allocation8 + $0x5f8] sm:$0xff]
    %v777 = vld [vmem:[#allocation8 + $0x600] sm:$0xff]
    %v778 = vld [vmem:[#allocation8 + $0x608] sm:$0xff]
    %v779 = vld [vmem:[#allocation8 + $0x610] sm:$0xff]
    %v780 = vld [vmem:[#allocation8 + $0x618] sm:$0xff]
    %v781 = vld [vmem:[#allocation8 + $0x620] sm:$0xff]
    %v782 = vld [vmem:[#allocation8 + $0x628] sm:$0xff]
    %v783 = vld [vmem:[#allocation8 + $0x630] sm:$0xff]
    %v784 = vld [vmem:[#allocation8 + $0x638] sm:$0xff]
    %v785 = vld [vmem:[#allocation8 + $0x640] sm:$0xff]
    %v786 = vld [vmem:[#allocation8 + $0x648] sm:$0xff]
    %v787 = vld [vmem:[#allocation8 + $0x650] sm:$0xff]
    %v788 = vld [vmem:[#allocation8 + $0x658] sm:$0xff]
    %v789 = vld [vmem:[#allocation8 + $0x660] sm:$0xff]
    %v790 = vld [vmem:[#allocation8 + $0x668] sm:$0xff]
    %v791 = vld [vmem:[#allocation8 + $0x670] sm:$0xff]
    %v792 = vld [vmem:[#allocation8 + $0x678] sm:$0xff]
    %v793 = vld [vmem:[#allocation8 + $0x680] sm:$0xff]
    %v794 = vld [vmem:[#allocation8 + $0x688] sm:$0xff]
    %v795 = vld [vmem:[#allocation8 + $0x690] sm:$0xff]
    %v796 = vld [vmem:[#allocation8 + $0x698] sm:$0xff]
    %v797 = vld [vmem:[#allocation8 + $0x6a0] sm:$0xff]
    %v798 = vld [vmem:[#allocation8 + $0x6a8] sm:$0xff]
    %v799 = vld [vmem:[#allocation8 + $0x6b0] sm:$0xff]
    %v800 = vld [vmem:[#allocation8 + $0x6b8] sm:$0xff]
    %v801 = vld [vmem:[#allocation8 + $0x6c0] sm:$0xff]
    %v802 = vld [vmem:[#allocation8 + $0x6c8] sm:$0xff]
    %v803 = vld [vmem:[#allocation8 + $0x6d0] sm:$0xff]
    %v804 = vld [vmem:[#allocation8 + $0x6d8] sm:$0xff]
    %v805 = vld [vmem:[#allocation8 + $0x6e0] sm:$0xff]
    %v806 = vld [vmem:[#allocation8 + $0x6e8] sm:$0xff]
    %v807 = vld [vmem:[#allocation8 + $0x6f0] sm:$0xff]
    %v808 = vld [vmem:[#allocation8 + $0x6f8] sm:$0xff]
    %v809 = vld [vmem:[#allocation8 + $0x700] sm:$0xff]
    %v810 = vld [vmem:[#allocation8 + $0x708] sm:$0xff]
    %v811 = vld [vmem:[#allocation8 + $0x710] sm:$0xff]
    %v812 = vld [vmem:[#allocation8 + $0x718] sm:$0xff]
    %v813 = vld [vmem:[#allocation8 + $0x720] sm:$0xff]
    %v814 = vld [vmem:[#allocation8 + $0x728] sm:$0xff]
    %v815 = vld [vmem:[#allocation8 + $0x730] sm:$0xff]
    %v816 = vld [vmem:[#allocation8 + $0x738] sm:$0xff]
    %v817 = vld [vmem:[#allocation8 + $0x740] sm:$0xff]
    %v818 = vld [vmem:[#allocation8 + $0x748] sm:$0xff]
    %v819 = vld [vmem:[#allocation8 + $0x750] sm:$0xff]
    %v820 = vld [vmem:[#allocation8 + $0x758] sm:$0xff]
    %v821 = vld [vmem:[#allocation8 + $0x760] sm:$0xff]
    %v822 = vld [vmem:[#allocation8 + $0x768] sm:$0xff]
    %v823 = vld [vmem:[#allocation8 + $0x770] sm:$0xff]
    %v824 = vld [vmem:[#allocation8 + $0x778] sm:$0xff]
    %v825 = vld [vmem:[#allocation8 + $0x780] sm:$0xff]
    %v826 = vld [vmem:[#allocation8 + $0x788] sm:$0xff]
    %v827 = vld [vmem:[#allocation8 + $0x790] sm:$0xff]
    %v828 = vld [vmem:[#allocation8 + $0x798] sm:$0xff]
    %v829 = vld [vmem:[#allocation8 + $0x7a0] sm:$0xff]
    %v830 = vld [vmem:[#allocation8 + $0x7a8] sm:$0xff]
    %v831 = vld [vmem:[#allocation8 + $0x7b0] sm:$0xff]
    %v832 = vld [vmem:[#allocation8 + $0x7b8] sm:$0xff]
    %v833 = vld [vmem:[#allocation8 + $0x7c0] sm:$0xff]
    %v834 = vld [vmem:[#allocation8 + $0x7c8] sm:$0xff]
    %v835 = vld [vmem:[#allocation8 + $0x7d0] sm:$0xff]
    %v836 = vld [vmem:[#allocation8 + $0x7d8] sm:$0xff]
    %v837 = vld [vmem:[#allocation8 + $0x7e0] sm:$0xff]
    %v838 = vld [vmem:[#allocation8 + $0x7e8] sm:$0xff]
    %v839 = vld [vmem:[#allocation8 + $0x7f0] sm:$0xff]
    %v840 = vld [vmem:[#allocation8 + $0x7f8] sm:$0xff]
    %v841 = vld [vmem:[#allocation2] sm:$0xff]
    %v842 = vld [vmem:[#allocation2 + $0x8] sm:$0xff]
    %v843 = vld [vmem:[#allocation2 + $0x10] sm:$0xff]
    %v844 = vld [vmem:[#allocation2 + $0x18] sm:$0xff]
    %v845 = vld [vmem:[#allocation2 + $0x20] sm:$0xff]
    %v846 = vld [vmem:[#allocation2 + $0x28] sm:$0xff]
    %v847 = vld [vmem:[#allocation2 + $0x30] sm:$0xff]
    %v848 = vld [vmem:[#allocation2 + $0x38] sm:$0xff]
    %v849 = vld [vmem:[#allocation2 + $0x40] sm:$0xff]
    %v850 = vld [vmem:[#allocation2 + $0x48] sm:$0xff]
    %v851 = vld [vmem:[#allocation2 + $0x50] sm:$0xff]
    %v852 = vld [vmem:[#allocation2 + $0x58] sm:$0xff]
    %v853 = vld [vmem:[#allocation2 + $0x60] sm:$0xff]
    %v854 = vld [vmem:[#allocation2 + $0x68] sm:$0xff]
    %v855 = vld [vmem:[#allocation2 + $0x70] sm:$0xff]
    %v856 = vld [vmem:[#allocation2 + $0x78] sm:$0xff]
    %v857 = vld [vmem:[#allocation2 + $0x80] sm:$0xff]
    %v858 = vld [vmem:[#allocation2 + $0x88] sm:$0xff]
    %v859 = vld [vmem:[#allocation2 + $0x90] sm:$0xff]
    %v860 = vld [vmem:[#allocation2 + $0x98] sm:$0xff]
    %v861 = vld [vmem:[#allocation2 + $0xa0] sm:$0xff]
    %v862 = vld [vmem:[#allocation2 + $0xa8] sm:$0xff]
    %v863 = vld [vmem:[#allocation2 + $0xb0] sm:$0xff]
    %v864 = vld [vmem:[#allocation2 + $0xb8] sm:$0xff]
    %v865 = vld [vmem:[#allocation2 + $0xc0] sm:$0xff]
    %v866 = vld [vmem:[#allocation2 + $0xc8] sm:$0xff]
    %v867 = vld [vmem:[#allocation2 + $0xd0] sm:$0xff]
    %v868 = vld [vmem:[#allocation2 + $0xd8] sm:$0xff]
    %v869 = vld [vmem:[#allocation2 + $0xe0] sm:$0xff]
    %v870 = vld [vmem:[#allocation2 + $0xe8] sm:$0xff]
    %v871 = vld [vmem:[#allocation2 + $0xf0] sm:$0xff]
    %v872 = vld [vmem:[#allocation2 + $0xf8] sm:$0xff]
    %v873 = vld [vmem:[#allocation2 + $0x100] sm:$0xff]
    %v874 = vld [vmem:[#allocation2 + $0x108] sm:$0xff]
    %v875 = vld [vmem:[#allocation2 + $0x110] sm:$0xff]
    %v876 = vld [vmem:[#allocation2 + $0x118] sm:$0xff]
    %v877 = vld [vmem:[#allocation2 + $0x120] sm:$0xff]
    %v878 = vld [vmem:[#allocation2 + $0x128] sm:$0xff]
    %v879 = vld [vmem:[#allocation2 + $0x130] sm:$0xff]
    %v880 = vld [vmem:[#allocation2 + $0x138] sm:$0xff]
    %v881 = vld [vmem:[#allocation2 + $0x140] sm:$0xff]
    %v882 = vld [vmem:[#allocation2 + $0x148] sm:$0xff]
    %v883 = vld [vmem:[#allocation2 + $0x150] sm:$0xff]
    %v884 = vld [vmem:[#allocation2 + $0x158] sm:$0xff]
    %v885 = vld [vmem:[#allocation2 + $0x160] sm:$0xff]
    %v886 = vld [vmem:[#allocation2 + $0x168] sm:$0xff]
    %v887 = vld [vmem:[#allocation2 + $0x170] sm:$0xff]
    %v888 = vld [vmem:[#allocation2 + $0x178] sm:$0xff]
    %v889 = vld [vmem:[#allocation2 + $0x180] sm:$0xff]
    %v890 = vld [vmem:[#allocation2 + $0x188] sm:$0xff]
    %v891 = vld [vmem:[#allocation2 + $0x190] sm:$0xff]
    %v892 = vld [vmem:[#allocation2 + $0x198] sm:$0xff]
    %v893 = vld [vmem:[#allocation2 + $0x1a0] sm:$0xff]
    %v894 = vld [vmem:[#allocation2 + $0x1a8] sm:$0xff]
    %v895 = vld [vmem:[#allocation2 + $0x1b0] sm:$0xff]
    %v896 = vld [vmem:[#allocation2 + $0x1b8] sm:$0xff]
    %v897 = vld [vmem:[#allocation2 + $0x1c0] sm:$0xff]
    %v898 = vld [vmem:[#allocation2 + $0x1c8] sm:$0xff]
    %v899 = vld [vmem:[#allocation2 + $0x1d0] sm:$0xff]
    %v900 = vld [vmem:[#allocation2 + $0x1d8] sm:$0xff]
    %v901 = vld [vmem:[#allocation2 + $0x1e0] sm:$0xff]
    %v902 = vld [vmem:[#allocation2 + $0x1e8] sm:$0xff]
    %v903 = vld [vmem:[#allocation2 + $0x1f0] sm:$0xff]
    %v904 = vld [vmem:[#allocation2 + $0x1f8] sm:$0xff]
    %905 = vmatprep.subr.mxu0 0.0
    %906 = vmatpush1.msra.mxu0 %v841
    %907 = vmatprep.subr.mxu0 0.0
    %908 = vmatpush1.msra.mxu0 %v842
    %909 = vmatprep.subr.mxu0 0.0
    %910 = vmatpush1.msra.mxu0 %v843
    %911 = vmatprep.subr.mxu0 0.0
    %912 = vmatpush1.msra.mxu0 %v844
    %913 = vmatprep.subr.mxu0 0.0
    %914 = vmatpush1.msra.mxu0 %v845
    %915 = vmatprep.subr.mxu0 0.0
    %916 = vmatpush1.msra.mxu0 %v846
    %917 = vmatprep.subr.mxu0 0.0
    %918 = vmatpush1.msra.mxu0 %v847
    %919 = vmatprep.subr.mxu0 0.0
    %920 = vmatpush1.msra.mxu0 %v848
    %921 = vmatprep.subr.mxu0 0.0
    %922 = vmatpush1.msra.mxu0 %v849
    %923 = vmatprep.subr.mxu0 0.0
    %924 = vmatpush1.msra.mxu0 %v850
    %925 = vmatprep.subr.mxu0 0.0
    %926 = vmatpush1.msra.mxu0 %v851
    %927 = vmatprep.subr.mxu0 0.0
    %928 = vmatpush1.msra.mxu0 %v852
    %929 = vmatprep.subr.mxu0 0.0
    %930 = vmatpush1.msra.mxu0 %v853
    %931 = vmatprep.subr.mxu0 0.0
    %932 = vmatpush1.msra.mxu0 %v854
    %933 = vmatprep.subr.mxu0 0.0
    %934 = vmatpush1.msra.mxu0 %v855
    %935 = vmatprep.subr.mxu0 0.0
    %936 = vmatpush1.msra.mxu0 %v856
    %937 = vmatprep.subr.mxu0 0.0
    %938 = vmatpush1.msra.mxu0 %v857
    %939 = vmatprep.subr.mxu0 0.0
    %940 = vmatpush1.msra.mxu0 %v858
    %941 = vmatprep.subr.mxu0 0.0
    %942 = vmatpush1.msra.mxu0 %v859
    %943 = vmatprep.subr.mxu0 0.0
    %944 = vmatpush1.msra.mxu0 %v860
    %945 = vmatprep.subr.mxu0 0.0
    %946 = vmatpush1.msra.mxu0 %v861
    %947 = vmatprep.subr.mxu0 0.0
    %948 = vmatpush1.msra.mxu0 %v862
    %949 = vmatprep.subr.mxu0 0.0
    %950 = vmatpush1.msra.mxu0 %v863
    %951 = vmatprep.subr.mxu0 0.0
    %952 = vmatpush1.msra.mxu0 %v864
    %953 = vmatprep.subr.mxu0 0.0
    %954 = vmatpush1.msra.mxu0 %v865
    %955 = vmatprep.subr.mxu0 0.0
    %956 = vmatpush1.msra.mxu0 %v866
    %957 = vmatprep.subr.mxu0 0.0
    %958 = vmatpush1.msra.mxu0 %v867
    %959 = vmatprep.subr.mxu0 0.0
    %960 = vmatpush1.msra.mxu0 %v868
    %961 = vmatprep.subr.mxu0 0.0
    %962 = vmatpush1.msra.mxu0 %v869
    %963 = vmatprep.subr.mxu0 0.0
    %964 = vmatpush1.msra.mxu0 %v870
    %965 = vmatprep.subr.mxu0 0.0
    %966 = vmatpush1.msra.mxu0 %v871
    %967 = vmatprep.subr.mxu0 0.0
    %968 = vmatpush1.msra.mxu0 %v872
    %969 = vmatprep.mubr.f32.mxu0 %v586
    %970 = vmatmul.mubr.f32.gmra.mrb[0].mxu0 %v585
    %v971 = vpop.f32.mrb[0].mxu0
    %v972 = vadd.f32 0.0, %v971
    %v973 = vpop.f32.mrb[0].mxu0
    %974 = vmatprep.mubr.f32.mxu0 %v590
    %975 = vmatmul.mubr.f32.gmra.mrb[0].mxu0 %v589
    %v976 = vpop.f32.mrb[0].mxu0
    %v977 = vadd.f32 0.0, %v976
    %v978 = vpop.f32.mrb[0].mxu0
    %979 = vmatprep.mubr.f32.mxu0 %v594
    %980 = vmatmul.mubr.f32.gmra.mrb[0].mxu0 %v593
    %v981 = vpop.f32.mrb[0].mxu0
    %v982 = vadd.f32 0.0, %v981
    %v983 = vpop.f32.mrb[0].mxu0
    %984 = vmatprep.mubr.f32.mxu0 %v598
    %985 = vmatmul.mubr.f32.gmra.mrb[0].mxu0 %v597
    %v986 = vpop.f32.mrb[0].mxu0
    %v987 = vadd.f32 0.0, %v986
    %v988 = vpop.f32.mrb[0].mxu0
    %989 = vmatprep.mubr.f32.mxu0 %v602
    %990 = vmatmul.mubr.f32.gmra.mrb[0].mxu0 %v601
    %v991 = vpop.f32.mrb[0].mxu0
    %v992 = vadd.f32 0.0, %v991
    %v993 = vpop.f32.mrb[0].mxu0
    %994 = vmatprep.mubr.f32.mxu0 %v606
    %995 = vmatmul.mubr.f32.gmra.mrb[0].mxu0 %v605
    %v996 = vpop.f32.mrb[0].mxu0
    %v997 = vadd.f32 0.0, %v996
    %v998 = vpop.f32.mrb[0].mxu0
    %999 = vmatprep.mubr.f32.mxu0 %v610
    %1000 = vmatmul.mubr.f32.gmra.mrb[0].mxu0 %v609
    %v1001 = vpop.f32.mrb[0].mxu0
    %v1002 = vadd.f32 0.0, %v1001
    %v1003 = vpop.f32.mrb[0].mxu0
    %1004 = vmatprep.mubr.f32.mxu0 %v614
    %1005 = vmatmul.mubr.f32.gmra.mrb[0].mxu0 %v613
    %v1006 = vpop.f32.mrb[0].mxu0
    %v1007 = vadd.f32 0.0, %v1006
    %v1008 = vpop.f32.mrb[0].mxu0
    %1009 = vmatprep.mubr.f32.mxu0 %v618
    %1010 = vmatmul.mubr.f32.gmra.mrb[0].mxu0 %v617
    %v1011 = vpop.f32.mrb[0].mxu0
    %v1012 = vadd.f32 0.0, %v1011
    %v1013 = vpop.f32.mrb[0].mxu0
    %1014 = vmatprep.mubr.f32.mxu0 %v622
    %1015 = vmatmul.mubr.f32.gmra.mrb[0].mxu0 %v621
    %v1016 = vpop.f32.mrb[0].mxu0
    %v1017 = vadd.f32 0.0, %v1016
    %v1018 = vpop.f32.mrb[0].mxu0
    %1019 = vmatprep.mubr.f32.mxu0 %v626
    %1020 = vmatmul.mubr.f32.gmra.mrb[0].mxu0 %v625
    %v1021 = vpop.f32.mrb[0].mxu0
    %v1022 = vadd.f32 0.0, %v1021
    %v1023 = vpop.f32.mrb[0].mxu0
    %1024 = vmatprep.mubr.f32.mxu0 %v630
    %1025 = vmatmul.mubr.f32.gmra.mrb[0].mxu0 %v629
    %v1026 = vpop.f32.mrb[0].mxu0
    %v1027 = vadd.f32 0.0, %v1026
    %v1028 = vpop.f32.mrb[0].mxu0
    %1029 = vmatprep.mubr.f32.mxu0 %v634
    %1030 = vmatmul.mubr.f32.gmra.mrb[0].mxu0 %v633
    %v1031 = vpop.f32.mrb[0].mxu0
    %v1032 = vadd.f32 0.0, %v1031
    %v1033 = vpop.f32.mrb[0].mxu0
    %1034 = vmatprep.mubr.f32.mxu0 %v638
    %1035 = vmatmul.mubr.f32.gmra.mrb[0].mxu0 %v637
    %v1036 = vpop.f32.mrb[0].mxu0
    %v1037 = vadd.f32 0.0, %v1036
    %v1038 = vpop.f32.mrb[0].mxu0
    %1039 = vmatprep.mubr.f32.mxu0 %v642
    %1040 = vmatmul.mubr.f32.gmra.mrb[0].mxu0 %v641
    %v1041 = vpop.f32.mrb[0].mxu0
    %v1042 = vadd.f32 0.0, %v1041
    %v1043 = vpop.f32.mrb[0].mxu0
    %1044 = vmatprep.mubr.f32.mxu0 %v646
    %1045 = vmatmul.mubr.f32.gmra.mrb[0].mxu0 %v645
    %v1046 = vpop.f32.mrb[0].mxu0
    %v1047 = vadd.f32 0.0, %v1046
    %v1048 = vpop.f32.mrb[0].mxu0
    %1049 = vmatprep.mubr.f32.mxu0 %v650
    %1050 = vmatmul.mubr.f32.gmra.mrb[0].mxu0 %v649
    %v1051 = vpop.f32.mrb[0].mxu0
    %v1052 = vadd.f32 0.0, %v1051
    %v1053 = vpop.f32.mrb[0].mxu0
    %1054 = vmatprep.mubr.f32.mxu0 %v654
    %1055 = vmatmul.mubr.f32.gmra.mrb[0].mxu0 %v653
    %v1056 = vpop.f32.mrb[0].mxu0
    %v1057 = vadd.f32 0.0, %v1056
    %v1058 = vpop.f32.mrb[0].mxu0
    %1059 = vmatprep.mubr.f32.mxu0 %v658
    %1060 = vmatmul.mubr.f32.gmra.mrb[0].mxu0 %v657
    %v1061 = vpop.f32.mrb[0].mxu0
    %v1062 = vadd.f32 0.0, %v1061
    %v1063 = vpop.f32.mrb[0].mxu0
    %1064 = vmatprep.mubr.f32.mxu0 %v662
    %1065 = vmatmul.mubr.f32.gmra.mrb[0].mxu0 %v661
    %v1066 = vpop.f32.mrb[0].mxu0
    %v1067 = vadd.f32 0.0, %v1066
    %v1068 = vpop.f32.mrb[0].mxu0
    %1069 = vmatprep.mubr.f32.mxu0 %v666
    %1070 = vmatmul.mubr.f32.gmra.mrb[0].mxu0 %v665
    %v1071 = vpop.f32.mrb[0].mxu0
    %v1072 = vadd.f32 0.0, %v1071
    %v1073 = vpop.f32.mrb[0].mxu0
    %1074 = vmatprep.mubr.f32.mxu0 %v670
    %1075 = vmatmul.mubr.f32.gmra.mrb[0].mxu0 %v669
    %v1076 = vpop.f32.mrb[0].mxu0
    %v1077 = vadd.f32 0.0, %v1076
    %v1078 = vpop.f32.mrb[0].mxu0
    %1079 = vmatprep.mubr.f32.mxu0 %v674
    %1080 = vmatmul.mubr.f32.gmra.mrb[0].mxu0 %v673
    %v1081 = vpop.f32.mrb[0].mxu0
    %v1082 = vadd.f32 0.0, %v1081
    %v1083 = vpop.f32.mrb[0].mxu0
    %1084 = vmatprep.mubr.f32.mxu0 %v678
    %1085 = vmatmul.mubr.f32.gmra.mrb[0].mxu0 %v677
    %v1086 = vpop.f32.mrb[0].mxu0
    %v1087 = vadd.f32 0.0, %v1086
    %v1088 = vpop.f32.mrb[0].mxu0
    %1089 = vmatprep.mubr.f32.mxu0 %v682
    %1090 = vmatmul.mubr.f32.gmra.mrb[0].mxu0 %v681
    %v1091 = vpop.f32.mrb[0].mxu0
    %v1092 = vadd.f32 0.0, %v1091
    %v1093 = vpop.f32.mrb[0].mxu0
    %1094 = vmatprep.mubr.f32.mxu0 %v686
    %1095 = vmatmul.mubr.f32.gmra.mrb[0].mxu0 %v685
    %v1096 = vpop.f32.mrb[0].mxu0
    %v1097 = vadd.f32 0.0, %v1096
    %v1098 = vpop.f32.mrb[0].mxu0
    %1099 = vmatprep.mubr.f32.mxu0 %v690
    %1100 = vmatmul.mubr.f32.gmra.mrb[0].mxu0 %v689
    %v1101 = vpop.f32.mrb[0].mxu0
    %v1102 = vadd.f32 0.0, %v1101
    %v1103 = vpop.f32.mrb[0].mxu0
    %1104 = vmatprep.mubr.f32.mxu0 %v694
    %1105 = vmatmul.mubr.f32.gmra.mrb[0].mxu0 %v693
    %v1106 = vpop.f32.mrb[0].mxu0
    %v1107 = vadd.f32 0.0, %v1106
    %v1108 = vpop.f32.mrb[0].mxu0
    %1109 = vmatprep.mubr.f32.mxu0 %v698
    %1110 = vmatmul.mubr.f32.gmra.mrb[0].mxu0 %v697
    %v1111 = vpop.f32.mrb[0].mxu0
    %v1112 = vadd.f32 0.0, %v1111
    %v1113 = vpop.f32.mrb[0].mxu0
    %1114 = vmatprep.mubr.f32.mxu0 %v702
    %1115 = vmatmul.mubr.f32.gmra.mrb[0].mxu0 %v701
    %v1116 = vpop.f32.mrb[0].mxu0
    %v1117 = vadd.f32 0.0, %v1116
    %v1118 = vpop.f32.mrb[0].mxu0
    %1119 = vmatprep.mubr.f32.mxu0 %v706
    %1120 = vmatmul.mubr.f32.gmra.mrb[0].mxu0 %v705
    %v1121 = vpop.f32.mrb[0].mxu0
    %v1122 = vadd.f32 0.0, %v1121
    %v1123 = vpop.f32.mrb[0].mxu0
    %1124 = vmatprep.mubr.f32.mxu0 %v710
    %1125 = vmatmul.mubr.f32.gmra.mrb[0].mxu0 %v709
    %v1126 = vpop.f32.mrb[0].mxu0
    %v1127 = vadd.f32 0.0, %v1126
    %v1128 = vpop.f32.mrb[0].mxu0
    %1129 = vmatprep.mubr.f32.mxu0 %v714
    %1130 = vmatmul.mubr.f32.gmra.mrb[0].mxu0 %v713
    %v1131 = vpop.f32.mrb[0].mxu0
    %v1132 = vadd.f32 0.0, %v1131
    %v1133 = vpop.f32.mrb[0].mxu0
    %1134 = vmatprep.mubr.f32.mxu0 %v718
    %1135 = vmatmul.mubr.f32.gmra.mrb[0].mxu0 %v717
    %v1136 = vpop.f32.mrb[0].mxu0
    %v1137 = vadd.f32 0.0, %v1136
    %v1138 = vpop.f32.mrb[0].mxu0
    %1139 = vmatprep.mubr.f32.mxu0 %v722
    %1140 = vmatmul.mubr.f32.gmra.mrb[0].mxu0 %v721
    %v1141 = vpop.f32.mrb[0].mxu0
    %v1142 = vadd.f32 0.0, %v1141
    %v1143 = vpop.f32.mrb[0].mxu0
    %1144 = vmatprep.mubr.f32.mxu0 %v726
    %1145 = vmatmul.mubr.f32.gmra.mrb[0].mxu0 %v725
    %v1146 = vpop.f32.mrb[0].mxu0
    %v1147 = vadd.f32 0.0, %v1146
    %v1148 = vpop.f32.mrb[0].mxu0
    %1149 = vmatprep.mubr.f32.mxu0 %v730
    %1150 = vmatmul.mubr.f32.gmra.mrb[0].mxu0 %v729
    %v1151 = vpop.f32.mrb[0].mxu0
    %v1152 = vadd.f32 0.0, %v1151
    %v1153 = vpop.f32.mrb[0].mxu0
    %1154 = vmatprep.mubr.f32.mxu0 %v734
    %1155 = vmatmul.mubr.f32.gmra.mrb[0].mxu0 %v733
    %v1156 = vpop.f32.mrb[0].mxu0
    %v1157 = vadd.f32 0.0, %v1156
    %v1158 = vpop.f32.mrb[0].mxu0
    %1159 = vmatprep.mubr.f32.mxu0 %v738
    %1160 = vmatmul.mubr.f32.gmra.mrb[0].mxu0 %v737
    %v1161 = vpop.f32.mrb[0].mxu0
    %v1162 = vadd.f32 0.0, %v1161
    %v1163 = vpop.f32.mrb[0].mxu0
    %1164 = vmatprep.mubr.f32.mxu0 %v742
    %1165 = vmatmul.mubr.f32.gmra.mrb[0].mxu0 %v741
    %v1166 = vpop.f32.mrb[0].mxu0
    %v1167 = vadd.f32 0.0, %v1166
    %v1168 = vpop.f32.mrb[0].mxu0
    %1169 = vmatprep.mubr.f32.mxu0 %v746
    %1170 = vmatmul.mubr.f32.gmra.mrb[0].mxu0 %v745
    %v1171 = vpop.f32.mrb[0].mxu0
    %v1172 = vadd.f32 0.0, %v1171
    %v1173 = vpop.f32.mrb[0].mxu0
    %1174 = vmatprep.mubr.f32.mxu0 %v750
    %1175 = vmatmul.mubr.f32.gmra.mrb[0].mxu0 %v749
    %v1176 = vpop.f32.mrb[0].mxu0
    %v1177 = vadd.f32 0.0, %v1176
    %v1178 = vpop.f32.mrb[0].mxu0
    %1179 = vmatprep.mubr.f32.mxu0 %v754
    %1180 = vmatmul.mubr.f32.gmra.mrb[0].mxu0 %v753
    %v1181 = vpop.f32.mrb[0].mxu0
    %v1182 = vadd.f32 0.0, %v1181
    %v1183 = vpop.f32.mrb[0].mxu0
    %1184 = vmatprep.mubr.f32.mxu0 %v758
    %1185 = vmatmul.mubr.f32.gmra.mrb[0].mxu0 %v757
    %v1186 = vpop.f32.mrb[0].mxu0
    %v1187 = vadd.f32 0.0, %v1186
    %v1188 = vpop.f32.mrb[0].mxu0
    %1189 = vmatprep.mubr.f32.mxu0 %v762
    %1190 = vmatmul.mubr.f32.gmra.mrb[0].mxu0 %v761
    %v1191 = vpop.f32.mrb[0].mxu0
    %v1192 = vadd.f32 0.0, %v1191
    %v1193 = vpop.f32.mrb[0].mxu0
    %1194 = vmatprep.mubr.f32.mxu0 %v766
    %1195 = vmatmul.mubr.f32.gmra.mrb[0].mxu0 %v765
    %v1196 = vpop.f32.mrb[0].mxu0
    %v1197 = vadd.f32 0.0, %v1196
    %v1198 = vpop.f32.mrb[0].mxu0
    %1199 = vmatprep.mubr.f32.mxu0 %v770
    %1200 = vmatmul.mubr.f32.gmra.mrb[0].mxu0 %v769
    %v1201 = vpop.f32.mrb[0].mxu0
    %v1202 = vadd.f32 0.0, %v1201
    %v1203 = vpop.f32.mrb[0].mxu0
    %1204 = vmatprep.mubr.f32.mxu0 %v774
    %1205 = vmatmul.mubr.f32.gmra.mrb[0].mxu0 %v773
    %v1206 = vpop.f32.mrb[0].mxu0
    %v1207 = vadd.f32 0.0, %v1206
    %v1208 = vpop.f32.mrb[0].mxu0
    %1209 = vmatprep.mubr.f32.mxu0 %v778
    %1210 = vmatmul.mubr.f32.gmra.mrb[0].mxu0 %v777
    %v1211 = vpop.f32.mrb[0].mxu0
    %v1212 = vadd.f32 0.0, %v1211
    %v1213 = vpop.f32.mrb[0].mxu0
    %1214 = vmatprep.mubr.f32.mxu0 %v782
    %1215 = vmatmul.mubr.f32.gmra.mrb[0].mxu0 %v781
    %v1216 = vpop.f32.mrb[0].mxu0
    %v1217 = vadd.f32 0.0, %v1216
    %v1218 = vpop.f32.mrb[0].mxu0
    %1219 = vmatprep.mubr.f32.mxu0 %v786
    %1220 = vmatmul.mubr.f32.gmra.mrb[0].mxu0 %v785
    %v1221 = vpop.f32.mrb[0].mxu0
    %v1222 = vadd.f32 0.0, %v1221
    %v1223 = vpop.f32.mrb[0].mxu0
    %1224 = vmatprep.mubr.f32.mxu0 %v790
    %1225 = vmatmul.mubr.f32.gmra.mrb[0].mxu0 %v789
    %v1226 = vpop.f32.mrb[0].mxu0
    %v1227 = vadd.f32 0.0, %v1226
    %v1228 = vpop.f32.mrb[0].mxu0
    %1229 = vmatprep.mubr.f32.mxu0 %v794
    %1230 = vmatmul.mubr.f32.gmra.mrb[0].mxu0 %v793
    %v1231 = vpop.f32.mrb[0].mxu0
    %v1232 = vadd.f32 0.0, %v1231
    %v1233 = vpop.f32.mrb[0].mxu0
    %1234 = vmatprep.mubr.f32.mxu0 %v798
    %1235 = vmatmul.mubr.f32.gmra.mrb[0].mxu0 %v797
    %v1236 = vpop.f32.mrb[0].mxu0
    %v1237 = vadd.f32 0.0, %v1236
    %v1238 = vpop.f32.mrb[0].mxu0
    %1239 = vmatprep.mubr.f32.mxu0 %v802
    %1240 = vmatmul.mubr.f32.gmra.mrb[0].mxu0 %v801
    %v1241 = vpop.f32.mrb[0].mxu0
    %v1242 = vadd.f32 0.0, %v1241
    %v1243 = vpop.f32.mrb[0].mxu0
    %1244 = vmatprep.mubr.f32.mxu0 %v806
    %1245 = vmatmul.mubr.f32.gmra.mrb[0].mxu0 %v805
    %v1246 = vpop.f32.mrb[0].mxu0
    %v1247 = vadd.f32 0.0, %v1246
    %v1248 = vpop.f32.mrb[0].mxu0
    %1249 = vmatprep.mubr.f32.mxu0 %v810
    %1250 = vmatmul.mubr.f32.gmra.mrb[0].mxu0 %v809
    %v1251 = vpop.f32.mrb[0].mxu0
    %v1252 = vadd.f32 0.0, %v1251
    %v1253 = vpop.f32.mrb[0].mxu0
    %1254 = vmatprep.mubr.f32.mxu0 %v814
    %1255 = vmatmul.mubr.f32.gmra.mrb[0].mxu0 %v813
    %v1256 = vpop.f32.mrb[0].mxu0
    %v1257 = vadd.f32 0.0, %v1256
    %v1258 = vpop.f32.mrb[0].mxu0
    %1259 = vmatprep.mubr.f32.mxu0 %v818
    %1260 = vmatmul.mubr.f32.gmra.mrb[0].mxu0 %v817
    %v1261 = vpop.f32.mrb[0].mxu0
    %v1262 = vadd.f32 0.0, %v1261
    %v1263 = vpop.f32.mrb[0].mxu0
    %1264 = vmatprep.mubr.f32.mxu0 %v822
    %1265 = vmatmul.mubr.f32.gmra.mrb[0].mxu0 %v821
    %v1266 = vpop.f32.mrb[0].mxu0
    %v1267 = vadd.f32 0.0, %v1266
    %v1268 = vpop.f32.mrb[0].mxu0
    %1269 = vmatprep.mubr.f32.mxu0 %v826
    %1270 = vmatmul.mubr.f32.gmra.mrb[0].mxu0 %v825
    %v1271 = vpop.f32.mrb[0].mxu0
    %v1272 = vadd.f32 0.0, %v1271
    %v1273 = vpop.f32.mrb[0].mxu0
    %1274 = vmatprep.mubr.f32.mxu0 %v830
    %1275 = vmatmul.mubr.f32.gmra.mrb[0].mxu0 %v829
    %v1276 = vpop.f32.mrb[0].mxu0
    %v1277 = vadd.f32 0.0, %v1276
    %v1278 = vpop.f32.mrb[0].mxu0
    %1279 = vmatprep.mubr.f32.mxu0 %v834
    %1280 = vmatmul.mubr.f32.gmra.mrb[0].mxu0 %v833
    %v1281 = vpop.f32.mrb[0].mxu0
    %v1282 = vadd.f32 0.0, %v1281
    %v1283 = vpop.f32.mrb[0].mxu0
    %1284 = vmatprep.mubr.f32.mxu0 %v838
    %1285 = vmatmul.mubr.f32.gmra.mrb[0].mxu0 %v837
    %v1286 = vpop.f32.mrb[0].mxu0
    %v1287 = vadd.f32 0.0, %v1286
    %v1288 = vpop.f32.mrb[0].mxu0
    %1289 = vdwg.mxu0
    %1290 = vmatprep.subr.mxu0 0.0
    %1291 = vmatpush1.msra.mxu0 %v873
    %1292 = vmatprep.subr.mxu0 0.0
    %1293 = vmatpush1.msra.mxu0 %v874
    %1294 = vmatprep.subr.mxu0 0.0
    %1295 = vmatpush1.msra.mxu0 %v875
    %1296 = vmatprep.subr.mxu0 0.0
    %1297 = vmatpush1.msra.mxu0 %v876
    %1298 = vmatprep.subr.mxu0 0.0
    %1299 = vmatpush1.msra.mxu0 %v877
    %1300 = vmatprep.subr.mxu0 0.0
    %1301 = vmatpush1.msra.mxu0 %v878
    %1302 = vmatprep.subr.mxu0 0.0
    %1303 = vmatpush1.msra.mxu0 %v879
    %1304 = vmatprep.subr.mxu0 0.0
    %1305 = vmatpush1.msra.mxu0 %v880
    %1306 = vmatprep.subr.mxu0 0.0
    %1307 = vmatpush1.msra.mxu0 %v881
    %1308 = vmatprep.subr.mxu0 0.0
    %1309 = vmatpush1.msra.mxu0 %v882
    %1310 = vmatprep.subr.mxu0 0.0
    %1311 = vmatpush1.msra.mxu0 %v883
    %1312 = vmatprep.subr.mxu0 0.0
    %1313 = vmatpush1.msra.mxu0 %v884
    %1314 = vmatprep.subr.mxu0 0.0
    %1315 = vmatpush1.msra.mxu0 %v885
    %1316 = vmatprep.subr.mxu0 0.0
    %1317 = vmatpush1.msra.mxu0 %v886
    %1318 = vmatprep.subr.mxu0 0.0
    %1319 = vmatpush1.msra.mxu0 %v887
    %1320 = vmatprep.subr.mxu0 0.0
    %1321 = vmatpush1.msra.mxu0 %v888
    %1322 = vmatprep.subr.mxu0 0.0
    %1323 = vmatpush1.msra.mxu0 %v889
    %1324 = vmatprep.subr.mxu0 0.0
    %1325 = vmatpush1.msra.mxu0 %v890
    %1326 = vmatprep.subr.mxu0 0.0
    %1327 = vmatpush1.msra.mxu0 %v891
    %1328 = vmatprep.subr.mxu0 0.0
    %1329 = vmatpush1.msra.mxu0 %v892
    %1330 = vmatprep.subr.mxu0 0.0
    %1331 = vmatpush1.msra.mxu0 %v893
    %1332 = vmatprep.subr.mxu0 0.0
    %1333 = vmatpush1.msra.mxu0 %v894
    %1334 = vmatprep.subr.mxu0 0.0
    %1335 = vmatpush1.msra.mxu0 %v895
    %1336 = vmatprep.subr.mxu0 0.0
    %1337 = vmatpush1.msra.mxu0 %v896
    %1338 = vmatprep.subr.mxu0 0.0
    %1339 = vmatpush1.msra.mxu0 %v897
    %1340 = vmatprep.subr.mxu0 0.0
    %1341 = vmatpush1.msra.mxu0 %v898
    %1342 = vmatprep.subr.mxu0 0.0
    %1343 = vmatpush1.msra.mxu0 %v899
    %1344 = vmatprep.subr.mxu0 0.0
    %1345 = vmatpush1.msra.mxu0 %v900
    %1346 = vmatprep.subr.mxu0 0.0
    %1347 = vmatpush1.msra.mxu0 %v901
    %1348 = vmatprep.subr.mxu0 0.0
    %1349 = vmatpush1.msra.mxu0 %v902
    %1350 = vmatprep.subr.mxu0 0.0
    %1351 = vmatpush1.msra.mxu0 %v903
    %1352 = vmatprep.subr.mxu0 0.0
    %1353 = vmatpush1.msra.mxu0 %v904
    %1354 = vmatprep.mubr.f32.mxu0 %v588
    %1355 = vmatmul.mubr.f32.gmra.mrb[0].mxu0 %v587
    %v1356 = vpop.f32.mrb[0].mxu0
    %v1357 = vadd.f32 %v972, %v1356
    %v1358 = vpop.f32.mrb[0].mxu0
    %1359 = vmatprep.mubr.f32.mxu0 %v592
    %1360 = vmatmul.mubr.f32.gmra.mrb[0].mxu0 %v591
    %v1361 = vpop.f32.mrb[0].mxu0
    %v1362 = vadd.f32 %v977, %v1361
    %v1363 = vpop.f32.mrb[0].mxu0
    %1364 = vmatprep.mubr.f32.mxu0 %v596
    %1365 = vmatmul.mubr.f32.gmra.mrb[0].mxu0 %v595
    %v1366 = vpop.f32.mrb[0].mxu0
    %v1367 = vadd.f32 %v982, %v1366
    %v1368 = vpop.f32.mrb[0].mxu0
    %1369 = vmatprep.mubr.f32.mxu0 %v600
    %1370 = vmatmul.mubr.f32.gmra.mrb[0].mxu0 %v599
    %v1371 = vpop.f32.mrb[0].mxu0
    %v1372 = vadd.f32 %v987, %v1371
    %v1373 = vpop.f32.mrb[0].mxu0
    %1374 = vmatprep.mubr.f32.mxu0 %v604
    %1375 = vmatmul.mubr.f32.gmra.mrb[0].mxu0 %v603
    %v1376 = vpop.f32.mrb[0].mxu0
    %v1377 = vadd.f32 %v992, %v1376
    %v1378 = vpop.f32.mrb[0].mxu0
    %1379 = vmatprep.mubr.f32.mxu0 %v608
    %1380 = vmatmul.mubr.f32.gmra.mrb[0].mxu0 %v607
    %v1381 = vpop.f32.mrb[0].mxu0
    %v1382 = vadd.f32 %v997, %v1381
    %v1383 = vpop.f32.mrb[0].mxu0
    %1384 = vmatprep.mubr.f32.mxu0 %v612
    %1385 = vmatmul.mubr.f32.gmra.mrb[0].mxu0 %v611
    %v1386 = vpop.f32.mrb[0].mxu0
    %v1387 = vadd.f32 %v1002, %v1386
    %v1388 = vpop.f32.mrb[0].mxu0
    %1389 = vmatprep.mubr.f32.mxu0 %v616
    %1390 = vmatmul.mubr.f32.gmra.mrb[0].mxu0 %v615
    %v1391 = vpop.f32.mrb[0].mxu0
    %v1392 = vadd.f32 %v1007, %v1391
    %v1393 = vpop.f32.mrb[0].mxu0
    %1394 = vmatprep.mubr.f32.mxu0 %v620
    %1395 = vmatmul.mubr.f32.gmra.mrb[0].mxu0 %v619
    %v1396 = vpop.f32.mrb[0].mxu0
    %v1397 = vadd.f32 %v1012, %v1396
    %v1398 = vpop.f32.mrb[0].mxu0
    %1399 = vmatprep.mubr.f32.mxu0 %v624
    %1400 = vmatmul.mubr.f32.gmra.mrb[0].mxu0 %v623
    %v1401 = vpop.f32.mrb[0].mxu0
    %v1402 = vadd.f32 %v1017, %v1401
    %v1403 = vpop.f32.mrb[0].mxu0
    %1404 = vmatprep.mubr.f32.mxu0 %v628
    %1405 = vmatmul.mubr.f32.gmra.mrb[0].mxu0 %v627
    %v1406 = vpop.f32.mrb[0].mxu0
    %v1407 = vadd.f32 %v1022, %v1406
    %v1408 = vpop.f32.mrb[0].mxu0
    %1409 = vmatprep.mubr.f32.mxu0 %v632
    %1410 = vmatmul.mubr.f32.gmra.mrb[0].mxu0 %v631
    %v1411 = vpop.f32.mrb[0].mxu0
    %v1412 = vadd.f32 %v1027, %v1411
    %v1413 = vpop.f32.mrb[0].mxu0
    %1414 = vmatprep.mubr.f32.mxu0 %v636
    %1415 = vmatmul.mubr.f32.gmra.mrb[0].mxu0 %v635
    %v1416 = vpop.f32.mrb[0].mxu0
    %v1417 = vadd.f32 %v1032, %v1416
    %v1418 = vpop.f32.mrb[0].mxu0
    %1419 = vmatprep.mubr.f32.mxu0 %v640
    %1420 = vmatmul.mubr.f32.gmra.mrb[0].mxu0 %v639
    %v1421 = vpop.f32.mrb[0].mxu0
    %v1422 = vadd.f32 %v1037, %v1421
    %v1423 = vpop.f32.mrb[0].mxu0
    %1424 = vmatprep.mubr.f32.mxu0 %v644
    %1425 = vmatmul.mubr.f32.gmra.mrb[0].mxu0 %v643
    %v1426 = vpop.f32.mrb[0].mxu0
    %v1427 = vadd.f32 %v1042, %v1426
    %v1428 = vpop.f32.mrb[0].mxu0
    %1429 = vmatprep.mubr.f32.mxu0 %v648
    %1430 = vmatmul.mubr.f32.gmra.mrb[0].mxu0 %v647
    %v1431 = vpop.f32.mrb[0].mxu0
    %v1432 = vadd.f32 %v1047, %v1431
    %v1433 = vpop.f32.mrb[0].mxu0
    %1434 = vmatprep.mubr.f32.mxu0 %v652
    %1435 = vmatmul.mubr.f32.gmra.mrb[0].mxu0 %v651
    %v1436 = vpop.f32.mrb[0].mxu0
    %v1437 = vadd.f32 %v1052, %v1436
    %v1438 = vpop.f32.mrb[0].mxu0
    %1439 = vmatprep.mubr.f32.mxu0 %v656
    %1440 = vmatmul.mubr.f32.gmra.mrb[0].mxu0 %v655
    %v1441 = vpop.f32.mrb[0].mxu0
    %v1442 = vadd.f32 %v1057, %v1441
    %v1443 = vpop.f32.mrb[0].mxu0
    %1444 = vmatprep.mubr.f32.mxu0 %v660
    %1445 = vmatmul.mubr.f32.gmra.mrb[0].mxu0 %v659
    %v1446 = vpop.f32.mrb[0].mxu0
    %v1447 = vadd.f32 %v1062, %v1446
    %v1448 = vpop.f32.mrb[0].mxu0
    %1449 = vmatprep.mubr.f32.mxu0 %v664
    %1450 = vmatmul.mubr.f32.gmra.mrb[0].mxu0 %v663
    %v1451 = vpop.f32.mrb[0].mxu0
    %v1452 = vadd.f32 %v1067, %v1451
    %v1453 = vpop.f32.mrb[0].mxu0
    %1454 = vmatprep.mubr.f32.mxu0 %v668
    %1455 = vmatmul.mubr.f32.gmra.mrb[0].mxu0 %v667
    %v1456 = vpop.f32.mrb[0].mxu0
    %v1457 = vadd.f32 %v1072, %v1456
    %v1458 = vpop.f32.mrb[0].mxu0
    %1459 = vmatprep.mubr.f32.mxu0 %v672
    %1460 = vmatmul.mubr.f32.gmra.mrb[0].mxu0 %v671
    %v1461 = vpop.f32.mrb[0].mxu0
    %v1462 = vadd.f32 %v1077, %v1461
    %v1463 = vpop.f32.mrb[0].mxu0
    %1464 = vmatprep.mubr.f32.mxu0 %v676
    %1465 = vmatmul.mubr.f32.gmra.mrb[0].mxu0 %v675
    %v1466 = vpop.f32.mrb[0].mxu0
    %v1467 = vadd.f32 %v1082, %v1466
    %v1468 = vpop.f32.mrb[0].mxu0
    %1469 = vmatprep.mubr.f32.mxu0 %v680
    %1470 = vmatmul.mubr.f32.gmra.mrb[0].mxu0 %v679
    %v1471 = vpop.f32.mrb[0].mxu0
    %v1472 = vadd.f32 %v1087, %v1471
    %v1473 = vpop.f32.mrb[0].mxu0
    %1474 = vmatprep.mubr.f32.mxu0 %v684
    %1475 = vmatmul.mubr.f32.gmra.mrb[0].mxu0 %v683
    %v1476 = vpop.f32.mrb[0].mxu0
    %v1477 = vadd.f32 %v1092, %v1476
    %v1478 = vpop.f32.mrb[0].mxu0
    %1479 = vmatprep.mubr.f32.mxu0 %v688
    %1480 = vmatmul.mubr.f32.gmra.mrb[0].mxu0 %v687
    %v1481 = vpop.f32.mrb[0].mxu0
    %v1482 = vadd.f32 %v1097, %v1481
    %v1483 = vpop.f32.mrb[0].mxu0
    %1484 = vmatprep.mubr.f32.mxu0 %v692
    %1485 = vmatmul.mubr.f32.gmra.mrb[0].mxu0 %v691
    %v1486 = vpop.f32.mrb[0].mxu0
    %v1487 = vadd.f32 %v1102, %v1486
    %v1488 = vpop.f32.mrb[0].mxu0
    %1489 = vmatprep.mubr.f32.mxu0 %v696
    %1490 = vmatmul.mubr.f32.gmra.mrb[0].mxu0 %v695
    %v1491 = vpop.f32.mrb[0].mxu0
    %v1492 = vadd.f32 %v1107, %v1491
    %v1493 = vpop.f32.mrb[0].mxu0
    %1494 = vmatprep.mubr.f32.mxu0 %v700
    %1495 = vmatmul.mubr.f32.gmra.mrb[0].mxu0 %v699
    %v1496 = vpop.f32.mrb[0].mxu0
    %v1497 = vadd.f32 %v1112, %v1496
    %v1498 = vpop.f32.mrb[0].mxu0
    %1499 = vmatprep.mubr.f32.mxu0 %v704
    %1500 = vmatmul.mubr.f32.gmra.mrb[0].mxu0 %v703
    %v1501 = vpop.f32.mrb[0].mxu0
    %v1502 = vadd.f32 %v1117, %v1501
    %v1503 = vpop.f32.mrb[0].mxu0
    %1504 = vmatprep.mubr.f32.mxu0 %v708
    %1505 = vmatmul.mubr.f32.gmra.mrb[0].mxu0 %v707
    %v1506 = vpop.f32.mrb[0].mxu0
    %v1507 = vadd.f32 %v1122, %v1506
    %v1508 = vpop.f32.mrb[0].mxu0
    %1509 = vmatprep.mubr.f32.mxu0 %v712
    %1510 = vmatmul.mubr.f32.gmra.mrb[0].mxu0 %v711
    %v1511 = vpop.f32.mrb[0].mxu0
    %v1512 = vadd.f32 %v1127, %v1511
    %v1513 = vpop.f32.mrb[0].mxu0
    %1514 = vmatprep.mubr.f32.mxu0 %v716
    %1515 = vmatmul.mubr.f32.gmra.mrb[0].mxu0 %v715
    %v1516 = vpop.f32.mrb[0].mxu0
    %v1517 = vadd.f32 %v1132, %v1516
    %v1518 = vpop.f32.mrb[0].mxu0
    %1519 = vmatprep.mubr.f32.mxu0 %v720
    %1520 = vmatmul.mubr.f32.gmra.mrb[0].mxu0 %v719
    %v1521 = vpop.f32.mrb[0].mxu0
    %v1522 = vadd.f32 %v1137, %v1521
    %v1523 = vpop.f32.mrb[0].mxu0
    %1524 = vmatprep.mubr.f32.mxu0 %v724
    %1525 = vmatmul.mubr.f32.gmra.mrb[0].mxu0 %v723
    %v1526 = vpop.f32.mrb[0].mxu0
    %v1527 = vadd.f32 %v1142, %v1526
    %v1528 = vpop.f32.mrb[0].mxu0
    %1529 = vmatprep.mubr.f32.mxu0 %v728
    %1530 = vmatmul.mubr.f32.gmra.mrb[0].mxu0 %v727
    %v1531 = vpop.f32.mrb[0].mxu0
    %v1532 = vadd.f32 %v1147, %v1531
    %v1533 = vpop.f32.mrb[0].mxu0
    %1534 = vmatprep.mubr.f32.mxu0 %v732
    %1535 = vmatmul.mubr.f32.gmra.mrb[0].mxu0 %v731
    %v1536 = vpop.f32.mrb[0].mxu0
    %v1537 = vadd.f32 %v1152, %v1536
    %v1538 = vpop.f32.mrb[0].mxu0
    %1539 = vmatprep.mubr.f32.mxu0 %v736
    %1540 = vmatmul.mubr.f32.gmra.mrb[0].mxu0 %v735
    %v1541 = vpop.f32.mrb[0].mxu0
    %v1542 = vadd.f32 %v1157, %v1541
    %v1543 = vpop.f32.mrb[0].mxu0
    %1544 = vmatprep.mubr.f32.mxu0 %v740
    %1545 = vmatmul.mubr.f32.gmra.mrb[0].mxu0 %v739
    %v1546 = vpop.f32.mrb[0].mxu0
    %v1547 = vadd.f32 %v1162, %v1546
    %v1548 = vpop.f32.mrb[0].mxu0
    %1549 = vmatprep.mubr.f32.mxu0 %v744
    %1550 = vmatmul.mubr.f32.gmra.mrb[0].mxu0 %v743
    %v1551 = vpop.f32.mrb[0].mxu0
    %v1552 = vadd.f32 %v1167, %v1551
    %v1553 = vpop.f32.mrb[0].mxu0
    %1554 = vmatprep.mubr.f32.mxu0 %v748
    %1555 = vmatmul.mubr.f32.gmra.mrb[0].mxu0 %v747
    %v1556 = vpop.f32.mrb[0].mxu0
    %v1557 = vadd.f32 %v1172, %v1556
    %v1558 = vpop.f32.mrb[0].mxu0
    %1559 = vmatprep.mubr.f32.mxu0 %v752
    %1560 = vmatmul.mubr.f32.gmra.mrb[0].mxu0 %v751
    %v1561 = vpop.f32.mrb[0].mxu0
    %v1562 = vadd.f32 %v1177, %v1561
    %v1563 = vpop.f32.mrb[0].mxu0
    %1564 = vmatprep.mubr.f32.mxu0 %v756
    %1565 = vmatmul.mubr.f32.gmra.mrb[0].mxu0 %v755
    %v1566 = vpop.f32.mrb[0].mxu0
    %v1567 = vadd.f32 %v1182, %v1566
    %v1568 = vpop.f32.mrb[0].mxu0
    %1569 = vmatprep.mubr.f32.mxu0 %v760
    %1570 = vmatmul.mubr.f32.gmra.mrb[0].mxu0 %v759
    %v1571 = vpop.f32.mrb[0].mxu0
    %v1572 = vadd.f32 %v1187, %v1571
    %v1573 = vpop.f32.mrb[0].mxu0
    %1574 = vmatprep.mubr.f32.mxu0 %v764
    %1575 = vmatmul.mubr.f32.gmra.mrb[0].mxu0 %v763
    %v1576 = vpop.f32.mrb[0].mxu0
    %v1577 = vadd.f32 %v1192, %v1576
    %v1578 = vpop.f32.mrb[0].mxu0
    %1579 = vmatprep.mubr.f32.mxu0 %v768
    %1580 = vmatmul.mubr.f32.gmra.mrb[0].mxu0 %v767
    %v1581 = vpop.f32.mrb[0].mxu0
    %v1582 = vadd.f32 %v1197, %v1581
    %v1583 = vpop.f32.mrb[0].mxu0
    %1584 = vmatprep.mubr.f32.mxu0 %v772
    %1585 = vmatmul.mubr.f32.gmra.mrb[0].mxu0 %v771
    %v1586 = vpop.f32.mrb[0].mxu0
    %v1587 = vadd.f32 %v1202, %v1586
    %v1588 = vpop.f32.mrb[0].mxu0
    %1589 = vmatprep.mubr.f32.mxu0 %v776
    %1590 = vmatmul.mubr.f32.gmra.mrb[0].mxu0 %v775
    %v1591 = vpop.f32.mrb[0].mxu0
    %v1592 = vadd.f32 %v1207, %v1591
    %v1593 = vpop.f32.mrb[0].mxu0
    %1594 = vmatprep.mubr.f32.mxu0 %v780
    %1595 = vmatmul.mubr.f32.gmra.mrb[0].mxu0 %v779
    %v1596 = vpop.f32.mrb[0].mxu0
    %v1597 = vadd.f32 %v1212, %v1596
    %v1598 = vpop.f32.mrb[0].mxu0
    %1599 = vmatprep.mubr.f32.mxu0 %v784
    %1600 = vmatmul.mubr.f32.gmra.mrb[0].mxu0 %v783
    %v1601 = vpop.f32.mrb[0].mxu0
    %v1602 = vadd.f32 %v1217, %v1601
    %v1603 = vpop.f32.mrb[0].mxu0
    %1604 = vmatprep.mubr.f32.mxu0 %v788
    %1605 = vmatmul.mubr.f32.gmra.mrb[0].mxu0 %v787
    %v1606 = vpop.f32.mrb[0].mxu0
    %v1607 = vadd.f32 %v1222, %v1606
    %v1608 = vpop.f32.mrb[0].mxu0
    %1609 = vmatprep.mubr.f32.mxu0 %v792
    %1610 = vmatmul.mubr.f32.gmra.mrb[0].mxu0 %v791
    %v1611 = vpop.f32.mrb[0].mxu0
    %v1612 = vadd.f32 %v1227, %v1611
    %v1613 = vpop.f32.mrb[0].mxu0
    %1614 = vmatprep.mubr.f32.mxu0 %v796
    %1615 = vmatmul.mubr.f32.gmra.mrb[0].mxu0 %v795
    %v1616 = vpop.f32.mrb[0].mxu0
    %v1617 = vadd.f32 %v1232, %v1616
    %v1618 = vpop.f32.mrb[0].mxu0
    %1619 = vmatprep.mubr.f32.mxu0 %v800
    %1620 = vmatmul.mubr.f32.gmra.mrb[0].mxu0 %v799
    %v1621 = vpop.f32.mrb[0].mxu0
    %v1622 = vadd.f32 %v1237, %v1621
    %v1623 = vpop.f32.mrb[0].mxu0
    %1624 = vmatprep.mubr.f32.mxu0 %v804
    %1625 = vmatmul.mubr.f32.gmra.mrb[0].mxu0 %v803
    %v1626 = vpop.f32.mrb[0].mxu0
    %v1627 = vadd.f32 %v1242, %v1626
    %v1628 = vpop.f32.mrb[0].mxu0
    %1629 = vmatprep.mubr.f32.mxu0 %v808
    %1630 = vmatmul.mubr.f32.gmra.mrb[0].mxu0 %v807
    %v1631 = vpop.f32.mrb[0].mxu0
    %v1632 = vadd.f32 %v1247, %v1631
    %v1633 = vpop.f32.mrb[0].mxu0
    %1634 = vmatprep.mubr.f32.mxu0 %v812
    %1635 = vmatmul.mubr.f32.gmra.mrb[0].mxu0 %v811
    %v1636 = vpop.f32.mrb[0].mxu0
    %v1637 = vadd.f32 %v1252, %v1636
    %v1638 = vpop.f32.mrb[0].mxu0
    %1639 = vmatprep.mubr.f32.mxu0 %v816
    %1640 = vmatmul.mubr.f32.gmra.mrb[0].mxu0 %v815
    %v1641 = vpop.f32.mrb[0].mxu0
    %v1642 = vadd.f32 %v1257, %v1641
    %v1643 = vpop.f32.mrb[0].mxu0
    %1644 = vmatprep.mubr.f32.mxu0 %v820
    %1645 = vmatmul.mubr.f32.gmra.mrb[0].mxu0 %v819
    %v1646 = vpop.f32.mrb[0].mxu0
    %v1647 = vadd.f32 %v1262, %v1646
    %v1648 = vpop.f32.mrb[0].mxu0
    %1649 = vmatprep.mubr.f32.mxu0 %v824
    %1650 = vmatmul.mubr.f32.gmra.mrb[0].mxu0 %v823
    %v1651 = vpop.f32.mrb[0].mxu0
    %v1652 = vadd.f32 %v1267, %v1651
    %v1653 = vpop.f32.mrb[0].mxu0
    %1654 = vmatprep.mubr.f32.mxu0 %v828
    %1655 = vmatmul.mubr.f32.gmra.mrb[0].mxu0 %v827
    %v1656 = vpop.f32.mrb[0].mxu0
    %v1657 = vadd.f32 %v1272, %v1656
    %v1658 = vpop.f32.mrb[0].mxu0
    %1659 = vmatprep.mubr.f32.mxu0 %v832
    %1660 = vmatmul.mubr.f32.gmra.mrb[0].mxu0 %v831
    %v1661 = vpop.f32.mrb[0].mxu0
    %v1662 = vadd.f32 %v1277, %v1661
    %v1663 = vpop.f32.mrb[0].mxu0
    %1664 = vmatprep.mubr.f32.mxu0 %v836
    %1665 = vmatmul.mubr.f32.gmra.mrb[0].mxu0 %v835
    %v1666 = vpop.f32.mrb[0].mxu0
    %v1667 = vadd.f32 %v1282, %v1666
    %v1668 = vpop.f32.mrb[0].mxu0
    %1669 = vmatprep.mubr.f32.mxu0 %v840
    %1670 = vmatmul.mubr.f32.gmra.mrb[0].mxu0 %v839
    %v1671 = vpop.f32.mrb[0].mxu0
    %v1672 = vadd.f32 %v1287, %v1671
    %v1673 = vpop.f32.mrb[0].mxu0
    %1674 = vdwg.mxu0
    %v1675 = vmax.f32 %v1357, 0.0
    %v1676 = vmax.f32 %v1362, 0.0
    %v1677 = vmax.f32 %v1367, 0.0
    %v1678 = vmax.f32 %v1372, 0.0
    %v1679 = vmax.f32 %v1377, 0.0
    %v1680 = vmax.f32 %v1382, 0.0
    %v1681 = vmax.f32 %v1387, 0.0
    %v1682 = vmax.f32 %v1392, 0.0
    %v1683 = vmax.f32 %v1397, 0.0
    %v1684 = vmax.f32 %v1402, 0.0
    %v1685 = vmax.f32 %v1407, 0.0
    %v1686 = vmax.f32 %v1412, 0.0
    %v1687 = vmax.f32 %v1417, 0.0
    %v1688 = vmax.f32 %v1422, 0.0
    %v1689 = vmax.f32 %v1427, 0.0
    %v1690 = vmax.f32 %v1432, 0.0
    %v1691 = vmax.f32 %v1437, 0.0
    %v1692 = vmax.f32 %v1442, 0.0
    %v1693 = vmax.f32 %v1447, 0.0
    %v1694 = vmax.f32 %v1452, 0.0
    %v1695 = vmax.f32 %v1457, 0.0
    %v1696 = vmax.f32 %v1462, 0.0
    %v1697 = vmax.f32 %v1467, 0.0
    %v1698 = vmax.f32 %v1472, 0.0
    %v1699 = vmax.f32 %v1477, 0.0
    %v1700 = vmax.f32 %v1482, 0.0
    %v1701 = vmax.f32 %v1487, 0.0
    %v1702 = vmax.f32 %v1492, 0.0
    %v1703 = vmax.f32 %v1497, 0.0
    %v1704 = vmax.f32 %v1502, 0.0
    %v1705 = vmax.f32 %v1507, 0.0
    %v1706 = vmax.f32 %v1512, 0.0
    %v1707 = vmax.f32 %v1517, 0.0
    %v1708 = vmax.f32 %v1522, 0.0
    %v1709 = vmax.f32 %v1527, 0.0
    %v1710 = vmax.f32 %v1532, 0.0
    %v1711 = vmax.f32 %v1537, 0.0
    %v1712 = vmax.f32 %v1542, 0.0
    %v1713 = vmax.f32 %v1547, 0.0
    %v1714 = vmax.f32 %v1552, 0.0
    %v1715 = vmax.f32 %v1557, 0.0
    %v1716 = vmax.f32 %v1562, 0.0
    %v1717 = vmax.f32 %v1567, 0.0
    %v1718 = vmax.f32 %v1572, 0.0
    %v1719 = vmax.f32 %v1577, 0.0
    %v1720 = vmax.f32 %v1582, 0.0
    %v1721 = vmax.f32 %v1587, 0.0
    %v1722 = vmax.f32 %v1592, 0.0
    %v1723 = vmax.f32 %v1597, 0.0
    %v1724 = vmax.f32 %v1602, 0.0
    %v1725 = vmax.f32 %v1607, 0.0
    %v1726 = vmax.f32 %v1612, 0.0
    %v1727 = vmax.f32 %v1617, 0.0
    %v1728 = vmax.f32 %v1622, 0.0
    %v1729 = vmax.f32 %v1627, 0.0
    %v1730 = vmax.f32 %v1632, 0.0
    %v1731 = vmax.f32 %v1637, 0.0
    %v1732 = vmax.f32 %v1642, 0.0
    %v1733 = vmax.f32 %v1647, 0.0
    %v1734 = vmax.f32 %v1652, 0.0
    %v1735 = vmax.f32 %v1657, 0.0
    %v1736 = vmax.f32 %v1662, 0.0
    %v1737 = vmax.f32 %v1667, 0.0
    %v1738 = vmax.f32 %v1672, 0.0
    %1739 = vst [vmem:[#allocation9] sm:$0xff] %v1675
    %1740 = vst [vmem:[#allocation9 + $0x8] sm:$0xff] %v1676
    %1741 = vst [vmem:[#allocation9 + $0x10] sm:$0xff] %v1677
    %1742 = vst [vmem:[#allocation9 + $0x18] sm:$0xff] %v1678
    %1743 = vst [vmem:[#allocation9 + $0x20] sm:$0xff] %v1679
    %1744 = vst [vmem:[#allocation9 + $0x28] sm:$0xff] %v1680
    %1745 = vst [vmem:[#allocation9 + $0x30] sm:$0xff] %v1681
    %1746 = vst [vmem:[#allocation9 + $0x38] sm:$0xff] %v1682
    %1747 = vst [vmem:[#allocation9 + $0x40] sm:$0xff] %v1683
    %1748 = vst [vmem:[#allocation9 + $0x48] sm:$0xff] %v1684
    %1749 = vst [vmem:[#allocation9 + $0x50] sm:$0xff] %v1685
    %1750 = vst [vmem:[#allocation9 + $0x58] sm:$0xff] %v1686
    %1751 = vst [vmem:[#allocation9 + $0x60] sm:$0xff] %v1687
    %1752 = vst [vmem:[#allocation9 + $0x68] sm:$0xff] %v1688
    %1753 = vst [vmem:[#allocation9 + $0x70] sm:$0xff] %v1689
    %1754 = vst [vmem:[#allocation9 + $0x78] sm:$0xff] %v1690
    %1755 = vst [vmem:[#allocation9 + $0x80] sm:$0xff] %v1691
    %1756 = vst [vmem:[#allocation9 + $0x88] sm:$0xff] %v1692
    %1757 = vst [vmem:[#allocation9 + $0x90] sm:$0xff] %v1693
    %1758 = vst [vmem:[#allocation9 + $0x98] sm:$0xff] %v1694
    %1759 = vst [vmem:[#allocation9 + $0xa0] sm:$0xff] %v1695
    %1760 = vst [vmem:[#allocation9 + $0xa8] sm:$0xff] %v1696
    %1761 = vst [vmem:[#allocation9 + $0xb0] sm:$0xff] %v1697
    %1762 = vst [vmem:[#allocation9 + $0xb8] sm:$0xff] %v1698
    %1763 = vst [vmem:[#allocation9 + $0xc0] sm:$0xff] %v1699
    %1764 = vst [vmem:[#allocation9 + $0xc8] sm:$0xff] %v1700
    %1765 = vst [vmem:[#allocation9 + $0xd0] sm:$0xff] %v1701
    %1766 = vst [vmem:[#allocation9 + $0xd8] sm:$0xff] %v1702
    %1767 = vst [vmem:[#allocation9 + $0xe0] sm:$0xff] %v1703
    %1768 = vst [vmem:[#allocation9 + $0xe8] sm:$0xff] %v1704
    %1769 = vst [vmem:[#allocation9 + $0xf0] sm:$0xff] %v1705
    %1770 = vst [vmem:[#allocation9 + $0xf8] sm:$0xff] %v1706
    %1771 = vst [vmem:[#allocation9 + $0x100] sm:$0xff] %v1707
    %1772 = vst [vmem:[#allocation9 + $0x108] sm:$0xff] %v1708
    %1773 = vst [vmem:[#allocation9 + $0x110] sm:$0xff] %v1709
    %1774 = vst [vmem:[#allocation9 + $0x118] sm:$0xff] %v1710
    %1775 = vst [vmem:[#allocation9 + $0x120] sm:$0xff] %v1711
    %1776 = vst [vmem:[#allocation9 + $0x128] sm:$0xff] %v1712
    %1777 = vst [vmem:[#allocation9 + $0x130] sm:$0xff] %v1713
    %1778 = vst [vmem:[#allocation9 + $0x138] sm:$0xff] %v1714
    %1779 = vst [vmem:[#allocation9 + $0x140] sm:$0xff] %v1715
    %1780 = vst [vmem:[#allocation9 + $0x148] sm:$0xff] %v1716
    %1781 = vst [vmem:[#allocation9 + $0x150] sm:$0xff] %v1717
    %1782 = vst [vmem:[#allocation9 + $0x158] sm:$0xff] %v1718
    %1783 = vst [vmem:[#allocation9 + $0x160] sm:$0xff] %v1719
    %1784 = vst [vmem:[#allocation9 + $0x168] sm:$0xff] %v1720
    %1785 = vst [vmem:[#allocation9 + $0x170] sm:$0xff] %v1721
    %1786 = vst [vmem:[#allocation9 + $0x178] sm:$0xff] %v1722
    %1787 = vst [vmem:[#allocation9 + $0x180] sm:$0xff] %v1723
    %1788 = vst [vmem:[#allocation9 + $0x188] sm:$0xff] %v1724
    %1789 = vst [vmem:[#allocation9 + $0x190] sm:$0xff] %v1725
    %1790 = vst [vmem:[#allocation9 + $0x198] sm:$0xff] %v1726
    %1791 = vst [vmem:[#allocation9 + $0x1a0] sm:$0xff] %v1727
    %1792 = vst [vmem:[#allocation9 + $0x1a8] sm:$0xff] %v1728
    %1793 = vst [vmem:[#allocation9 + $0x1b0] sm:$0xff] %v1729
    %1794 = vst [vmem:[#allocation9 + $0x1b8] sm:$0xff] %v1730
    %1795 = vst [vmem:[#allocation9 + $0x1c0] sm:$0xff] %v1731
    %1796 = vst [vmem:[#allocation9 + $0x1c8] sm:$0xff] %v1732
    %1797 = vst [vmem:[#allocation9 + $0x1d0] sm:$0xff] %v1733
    %1798 = vst [vmem:[#allocation9 + $0x1d8] sm:$0xff] %v1734
    %1799 = vst [vmem:[#allocation9 + $0x1e0] sm:$0xff] %v1735
    %1800 = vst [vmem:[#allocation9 + $0x1e8] sm:$0xff] %v1736
    %1801 = vst [vmem:[#allocation9 + $0x1f0] sm:$0xff] %v1737
    %1802 = vst [vmem:[#allocation9 + $0x1f8] sm:$0xff] %v1738
    // Predicated region
    $region26: #{tpu_custom_call.1} parent=1 // pred_check
      _
    $region27: #{tpu_custom_call.1} parent=1 // pred_check_branch
      %1804 = sbr.rel (0) target = $region29
    $region28: #{tpu_custom_call.1} parent=1 // pred_region
      %s1806 = ssub.s32 8192, 8192
      %1807 = vsyncadd [#allocation5], %s1806
      %s1808 = sshll.u32 [#allocation9], 4
      %s1809 = int_to_ptr.vmem [resolvable:$true] %s1808
      %1814 = dma.vmem_to_hbm [thread:$0]  %s1809, 8192, %s3, [#allocation5], 128, 128, 8
    $region29: #{tpu_custom_call.1} parent=1 // pred_fallthru
      _
    // Predicated region
    $region30: #{tpu_custom_call.1} parent=1 // pred_check
      _
    $region31: #{tpu_custom_call.1} parent=1 // pred_check_branch
      %1816 = sbr.rel (0) target = $region33
    $region32: #{tpu_custom_call.1} parent=1 // pred_region
      %1817 = dma.done [#allocation5], 8192
    $region33: #{tpu_custom_call.1} parent=1 // pred_fallthru
      _
    %1818 = vsyncpa [#allocation4], 1
    %1819 = vsyncpa [#allocation7], 1
    %1820 = vsyncpa [#allocation5], 1

</llo_original>
